<compile_context>
chip_gen: v5e
topology: v5e:2x2
jax: 0.10.0
libtpu: 0.0.40
codegen_flags: <defaults>
</compile_context>

<pallas_src>
import jax
import jax.numpy as jnp
from jax.experimental import pallas as pl
from jax.experimental.pallas import tpu as pltpu


def conv3x3_relu_kernel(w_ref, x_ref, o_ref):
    # w_ref: (OC*C*KH*KW,) float32 in SMEM  (flattened OIHW Conv2d weight)
    # x_ref: (N, C, H, W)   float32 in VMEM (NCHW, same as PyTorch)
    # o_ref: (N, OC, OH, OW) float32 in VMEM (NCHW)
    N, C, H, W = x_ref.shape
    _, OC, OH, OW = o_ref.shape
    KH = H - OH + 1
    KW = W - OW + 1

    # One f32 accumulator per output channel (N, 1, OH, OW): small, stays in
    # vregs for the whole kernel.
    accs = [jnp.zeros((N, 1, OH, OW), dtype=jnp.float32) for _ in range(OC)]

    # 27 taps (c, kh, kw), fully unrolled.  Each tap loads its shifted spatial
    # window from the VMEM ref once and feeds OC scalar-broadcast FMAs on the
    # VPU; the scalar weights come from SMEM (scalar slots, essentially free).
    for c in range(C):
        for kh in range(KH):
            for kw in range(KW):
                xs = x_ref[:, c:c + 1, kh:kh + OH, kw:kw + OW]  # (N,1,OH,OW)
                for oc in range(OC):
                    w_scalar = w_ref[((oc * C + c) * KH + kh) * KW + kw]
                    accs[oc] = accs[oc] + w_scalar * xs

    # Fused ReLU (nn.ReLU) + store, one output channel at a time.
    for oc in range(OC):
        o_ref[:, oc:oc + 1, :, :] = jnp.maximum(accs[oc], 0.0).astype(o_ref.dtype)


def submodule_forward(x_nchw, w_oihw):
    """SubModule forward: quant (id) -> conv2d(3,3,3,no bias) -> relu -> dequant (id).

    x_nchw: (N, 3, H, W) float32  (NCHW, as PyTorch)
    w_oihw: (3, 3, 3, 3) float32  (OIHW, as PyTorch Conv2d weight)
    returns (N, 3, H-2, W-2) float32 in NCHW.
    """
    N, C, H, W = x_nchw.shape
    OC, IC, KH, KW = w_oihw.shape
    assert IC == C
    OH, OW = H - KH + 1, W - KW + 1

    # Pure reshape (no transpose): 81 weights, staged into SMEM by Pallas.
    w_flat = w_oihw.reshape(-1)

    return pl.pallas_call(
        conv3x3_relu_kernel,
        out_shape=jax.ShapeDtypeStruct((N, OC, OH, OW), jnp.float32),
        in_specs=[
            pl.BlockSpec(memory_space=pltpu.MemorySpace.SMEM),     # weights
            pl.BlockSpec((N, C, H, W), lambda: (0, 0, 0, 0)),      # activations
        ],
        out_specs=pl.BlockSpec((N, OC, OH, OW), lambda: (0, 0, 0, 0)),
    )(w_flat, x_nchw)


if __name__ == "__main__":
    key = jax.random.PRNGKey(0)
    kx, kw = jax.random.split(key)

    # Shapes consistent with the module: Conv2d(3, 3, 3, bias=False).
    N, C, H, W = 2, 3, 16, 16
    x = jax.random.normal(kx, (N, C, H, W), dtype=jnp.float32)

    # Deterministic weight init (kaiming-uniform-like bound = 1/sqrt(fan_in)).
    fan_in = C * 3 * 3
    bound = 1.0 / jnp.sqrt(fan_in)
    w = jax.random.uniform(kw, (3, C, 3, 3), dtype=jnp.float32,
                           minval=-bound, maxval=bound)

    out = submodule_forward(x, w)
    out = jax.block_until_ready(out)

    # Reference: XLA conv (highest precision, matching the kernel's exact f32
    # VPU math) followed by ReLU.
    ref = jax.lax.conv_general_dilated(
        x, w, window_strides=(1, 1), padding="VALID",
        dimension_numbers=("NCHW", "OIHW", "NCHW"),
        precision=jax.lax.Precision.HIGHEST)
    ref = jnp.maximum(ref, 0.0)

    assert out.shape == (N, 3, H - 2, W - 2)
    assert jnp.allclose(out, ref, atol=1e-5, rtol=1e-5)

    print("KERNEL_OK")
</pallas_src>

<mosaic_0001>
module attributes {stable_mosaic.version = 11 : i64} {
  func.func @conv3x3_relu_kernel(%arg0: memref<81xf32, #tpu.memory_space<smem>>, %arg1: memref<2x3x16x16xf32, #tpu.memory_space<vmem>>, %arg2: memref<2x3x14x14xf32, #tpu.memory_space<vmem>>) attributes {dimension_semantics = [], scalar_prefetch = 0 : i64, scratch_operands = 0 : i64, tpu.core_type = #tpu.core_type<tc>} {
    %cst = arith.constant 0.000000e+00 : f32
    %0 = vector.broadcast %cst : f32 to vector<2x1x14x14xf32>
    %cst_0 = arith.constant 0.000000e+00 : f32
    %1 = vector.broadcast %cst_0 : f32 to vector<2x1x14x14xf32>
    %cst_1 = arith.constant 0.000000e+00 : f32
    %2 = vector.broadcast %cst_1 : f32 to vector<2x1x14x14xf32>
    %c0 = arith.constant 0 : index
    %c0_2 = arith.constant 0 : index
    %c0_3 = arith.constant 0 : index
    %c0_4 = arith.constant 0 : index
    %3 = vector.load %arg1[%c0, %c0_2, %c0_3, %c0_4] : memref<2x3x16x16xf32, #tpu.memory_space<vmem>>, vector<2x1x14x14xf32>
    %c0_5 = arith.constant 0 : index
    %4 = memref.load %arg0[%c0_5] : memref<81xf32, #tpu.memory_space<smem>>
    %5 = vector.broadcast %4 : f32 to vector<2x1x14x14xf32>
    %6 = arith.mulf %5, %3 : vector<2x1x14x14xf32>
    %7 = arith.addf %0, %6 : vector<2x1x14x14xf32>
    %c27 = arith.constant 27 : index
    %8 = memref.load %arg0[%c27] : memref<81xf32, #tpu.memory_space<smem>>
    %9 = vector.broadcast %8 : f32 to vector<2x1x14x14xf32>
    %10 = arith.mulf %9, %3 : vector<2x1x14x14xf32>
    %11 = arith.addf %1, %10 : vector<2x1x14x14xf32>
    %c54 = arith.constant 54 : index
    %12 = memref.load %arg0[%c54] : memref<81xf32, #tpu.memory_space<smem>>
    %13 = vector.broadcast %12 : f32 to vector<2x1x14x14xf32>
    %14 = arith.mulf %13, %3 : vector<2x1x14x14xf32>
    %15 = arith.addf %2, %14 : vector<2x1x14x14xf32>
    %c0_6 = arith.constant 0 : index
    %c0_7 = arith.constant 0 : index
    %c0_8 = arith.constant 0 : index
    %c1 = arith.constant 1 : index
    %16 = vector.load %arg1[%c0_6, %c0_7, %c0_8, %c1] : memref<2x3x16x16xf32, #tpu.memory_space<vmem>>, vector<2x1x14x14xf32>
    %c1_9 = arith.constant 1 : index
    %17 = memref.load %arg0[%c1_9] : memref<81xf32, #tpu.memory_space<smem>>
    %18 = vector.broadcast %17 : f32 to vector<2x1x14x14xf32>
    %19 = arith.mulf %18, %16 : vector<2x1x14x14xf32>
    %20 = arith.addf %7, %19 : vector<2x1x14x14xf32>
    %c28 = arith.constant 28 : index
    %21 = memref.load %arg0[%c28] : memref<81xf32, #tpu.memory_space<smem>>
    %22 = vector.broadcast %21 : f32 to vector<2x1x14x14xf32>
    %23 = arith.mulf %22, %16 : vector<2x1x14x14xf32>
    %24 = arith.addf %11, %23 : vector<2x1x14x14xf32>
    %c55 = arith.constant 55 : index
    %25 = memref.load %arg0[%c55] : memref<81xf32, #tpu.memory_space<smem>>
    %26 = vector.broadcast %25 : f32 to vector<2x1x14x14xf32>
    %27 = arith.mulf %26, %16 : vector<2x1x14x14xf32>
    %28 = arith.addf %15, %27 : vector<2x1x14x14xf32>
    %c0_10 = arith.constant 0 : index
    %c0_11 = arith.constant 0 : index
    %c0_12 = arith.constant 0 : index
    %c2 = arith.constant 2 : index
    %29 = vector.load %arg1[%c0_10, %c0_11, %c0_12, %c2] : memref<2x3x16x16xf32, #tpu.memory_space<vmem>>, vector<2x1x14x14xf32>
    %c2_13 = arith.constant 2 : index
    %30 = memref.load %arg0[%c2_13] : memref<81xf32, #tpu.memory_space<smem>>
    %31 = vector.broadcast %30 : f32 to vector<2x1x14x14xf32>
    %32 = arith.mulf %31, %29 : vector<2x1x14x14xf32>
    %33 = arith.addf %20, %32 : vector<2x1x14x14xf32>
    %c29 = arith.constant 29 : index
    %34 = memref.load %arg0[%c29] : memref<81xf32, #tpu.memory_space<smem>>
    %35 = vector.broadcast %34 : f32 to vector<2x1x14x14xf32>
    %36 = arith.mulf %35, %29 : vector<2x1x14x14xf32>
    %37 = arith.addf %24, %36 : vector<2x1x14x14xf32>
    %c56 = arith.constant 56 : index
    %38 = memref.load %arg0[%c56] : memref<81xf32, #tpu.memory_space<smem>>
    %39 = vector.broadcast %38 : f32 to vector<2x1x14x14xf32>
    %40 = arith.mulf %39, %29 : vector<2x1x14x14xf32>
    %41 = arith.addf %28, %40 : vector<2x1x14x14xf32>
    %c0_14 = arith.constant 0 : index
    %c0_15 = arith.constant 0 : index
    %c1_16 = arith.constant 1 : index
    %c0_17 = arith.constant 0 : index
    %42 = vector.load %arg1[%c0_14, %c0_15, %c1_16, %c0_17] : memref<2x3x16x16xf32, #tpu.memory_space<vmem>>, vector<2x1x14x14xf32>
    %c3 = arith.constant 3 : index
    %43 = memref.load %arg0[%c3] : memref<81xf32, #tpu.memory_space<smem>>
    %44 = vector.broadcast %43 : f32 to vector<2x1x14x14xf32>
    %45 = arith.mulf %44, %42 : vector<2x1x14x14xf32>
    %46 = arith.addf %33, %45 : vector<2x1x14x14xf32>
    %c30 = arith.constant 30 : index
    %47 = memref.load %arg0[%c30] : memref<81xf32, #tpu.memory_space<smem>>
    %48 = vector.broadcast %47 : f32 to vector<2x1x14x14xf32>
    %49 = arith.mulf %48, %42 : vector<2x1x14x14xf32>
    %50 = arith.addf %37, %49 : vector<2x1x14x14xf32>
    %c57 = arith.constant 57 : index
    %51 = memref.load %arg0[%c57] : memref<81xf32, #tpu.memory_space<smem>>
    %52 = vector.broadcast %51 : f32 to vector<2x1x14x14xf32>
    %53 = arith.mulf %52, %42 : vector<2x1x14x14xf32>
    %54 = arith.addf %41, %53 : vector<2x1x14x14xf32>
    %c0_18 = arith.constant 0 : index
    %c0_19 = arith.constant 0 : index
    %c1_20 = arith.constant 1 : index
    %c1_21 = arith.constant 1 : index
    %55 = vector.load %arg1[%c0_18, %c0_19, %c1_20, %c1_21] : memref<2x3x16x16xf32, #tpu.memory_space<vmem>>, vector<2x1x14x14xf32>
    %c4 = arith.constant 4 : index
    %56 = memref.load %arg0[%c4] : memref<81xf32, #tpu.memory_space<smem>>
    %57 = vector.broadcast %56 : f32 to vector<2x1x14x14xf32>
    %58 = arith.mulf %57, %55 : vector<2x1x14x14xf32>
    %59 = arith.addf %46, %58 : vector<2x1x14x14xf32>
    %c31 = arith.constant 31 : index
    %60 = memref.load %arg0[%c31] : memref<81xf32, #tpu.memory_space<smem>>
    %61 = vector.broadcast %60 : f32 to vector<2x1x14x14xf32>
    %62 = arith.mulf %61, %55 : vector<2x1x14x14xf32>
    %63 = arith.addf %50, %62 : vector<2x1x14x14xf32>
    %c58 = arith.constant 58 : index
    %64 = memref.load %arg0[%c58] : memref<81xf32, #tpu.memory_space<smem>>
    %65 = vector.broadcast %64 : f32 to vector<2x1x14x14xf32>
    %66 = arith.mulf %65, %55 : vector<2x1x14x14xf32>
    %67 = arith.addf %54, %66 : vector<2x1x14x14xf32>
    %c0_22 = arith.constant 0 : index
    %c0_23 = arith.constant 0 : index
    %c1_24 = arith.constant 1 : index
    %c2_25 = arith.constant 2 : index
    %68 = vector.load %arg1[%c0_22, %c0_23, %c1_24, %c2_25] : memref<2x3x16x16xf32, #tpu.memory_space<vmem>>, vector<2x1x14x14xf32>
    %c5 = arith.constant 5 : index
    %69 = memref.load %arg0[%c5] : memref<81xf32, #tpu.memory_space<smem>>
    %70 = vector.broadcast %69 : f32 to vector<2x1x14x14xf32>
    %71 = arith.mulf %70, %68 : vector<2x1x14x14xf32>
    %72 = arith.addf %59, %71 : vector<2x1x14x14xf32>
    %c32 = arith.constant 32 : index
    %73 = memref.load %arg0[%c32] : memref<81xf32, #tpu.memory_space<smem>>
    %74 = vector.broadcast %73 : f32 to vector<2x1x14x14xf32>
    %75 = arith.mulf %74, %68 : vector<2x1x14x14xf32>
    %76 = arith.addf %63, %75 : vector<2x1x14x14xf32>
    %c59 = arith.constant 59 : index
    %77 = memref.load %arg0[%c59] : memref<81xf32, #tpu.memory_space<smem>>
    %78 = vector.broadcast %77 : f32 to vector<2x1x14x14xf32>
    %79 = arith.mulf %78, %68 : vector<2x1x14x14xf32>
    %80 = arith.addf %67, %79 : vector<2x1x14x14xf32>
    %c0_26 = arith.constant 0 : index
    %c0_27 = arith.constant 0 : index
    %c2_28 = arith.constant 2 : index
    %c0_29 = arith.constant 0 : index
    %81 = vector.load %arg1[%c0_26, %c0_27, %c2_28, %c0_29] : memref<2x3x16x16xf32, #tpu.memory_space<vmem>>, vector<2x1x14x14xf32>
    %c6 = arith.constant 6 : index
    %82 = memref.load %arg0[%c6] : memref<81xf32, #tpu.memory_space<smem>>
    %83 = vector.broadcast %82 : f32 to vector<2x1x14x14xf32>
    %84 = arith.mulf %83, %81 : vector<2x1x14x14xf32>
    %85 = arith.addf %72, %84 : vector<2x1x14x14xf32>
    %c33 = arith.constant 33 : index
    %86 = memref.load %arg0[%c33] : memref<81xf32, #tpu.memory_space<smem>>
    %87 = vector.broadcast %86 : f32 to vector<2x1x14x14xf32>
    %88 = arith.mulf %87, %81 : vector<2x1x14x14xf32>
    %89 = arith.addf %76, %88 : vector<2x1x14x14xf32>
    %c60 = arith.constant 60 : index
    %90 = memref.load %arg0[%c60] : memref<81xf32, #tpu.memory_space<smem>>
    %91 = vector.broadcast %90 : f32 to vector<2x1x14x14xf32>
    %92 = arith.mulf %91, %81 : vector<2x1x14x14xf32>
    %93 = arith.addf %80, %92 : vector<2x1x14x14xf32>
    %c0_30 = arith.constant 0 : index
    %c0_31 = arith.constant 0 : index
    %c2_32 = arith.constant 2 : index
    %c1_33 = arith.constant 1 : index
    %94 = vector.load %arg1[%c0_30, %c0_31, %c2_32, %c1_33] : memref<2x3x16x16xf32, #tpu.memory_space<vmem>>, vector<2x1x14x14xf32>
    %c7 = arith.constant 7 : index
    %95 = memref.load %arg0[%c7] : memref<81xf32, #tpu.memory_space<smem>>
    %96 = vector.broadcast %95 : f32 to vector<2x1x14x14xf32>
    %97 = arith.mulf %96, %94 : vector<2x1x14x14xf32>
    %98 = arith.addf %85, %97 : vector<2x1x14x14xf32>
    %c34 = arith.constant 34 : index
    %99 = memref.load %arg0[%c34] : memref<81xf32, #tpu.memory_space<smem>>
    %100 = vector.broadcast %99 : f32 to vector<2x1x14x14xf32>
    %101 = arith.mulf %100, %94 : vector<2x1x14x14xf32>
    %102 = arith.addf %89, %101 : vector<2x1x14x14xf32>
    %c61 = arith.constant 61 : index
    %103 = memref.load %arg0[%c61] : memref<81xf32, #tpu.memory_space<smem>>
    %104 = vector.broadcast %103 : f32 to vector<2x1x14x14xf32>
    %105 = arith.mulf %104, %94 : vector<2x1x14x14xf32>
    %106 = arith.addf %93, %105 : vector<2x1x14x14xf32>
    %c0_34 = arith.constant 0 : index
    %c0_35 = arith.constant 0 : index
    %c2_36 = arith.constant 2 : index
    %c2_37 = arith.constant 2 : index
    %107 = vector.load %arg1[%c0_34, %c0_35, %c2_36, %c2_37] : memref<2x3x16x16xf32, #tpu.memory_space<vmem>>, vector<2x1x14x14xf32>
    %c8 = arith.constant 8 : index
    %108 = memref.load %arg0[%c8] : memref<81xf32, #tpu.memory_space<smem>>
    %109 = vector.broadcast %108 : f32 to vector<2x1x14x14xf32>
    %110 = arith.mulf %109, %107 : vector<2x1x14x14xf32>
    %111 = arith.addf %98, %110 : vector<2x1x14x14xf32>
    %c35 = arith.constant 35 : index
    %112 = memref.load %arg0[%c35] : memref<81xf32, #tpu.memory_space<smem>>
    %113 = vector.broadcast %112 : f32 to vector<2x1x14x14xf32>
    %114 = arith.mulf %113, %107 : vector<2x1x14x14xf32>
    %115 = arith.addf %102, %114 : vector<2x1x14x14xf32>
    %c62 = arith.constant 62 : index
    %116 = memref.load %arg0[%c62] : memref<81xf32, #tpu.memory_space<smem>>
    %117 = vector.broadcast %116 : f32 to vector<2x1x14x14xf32>
    %118 = arith.mulf %117, %107 : vector<2x1x14x14xf32>
    %119 = arith.addf %106, %118 : vector<2x1x14x14xf32>
    %c0_38 = arith.constant 0 : index
    %c1_39 = arith.constant 1 : index
    %c0_40 = arith.constant 0 : index
    %c0_41 = arith.constant 0 : index
    %120 = vector.load %arg1[%c0_38, %c1_39, %c0_40, %c0_41] : memref<2x3x16x16xf32, #tpu.memory_space<vmem>>, vector<2x1x14x14xf32>
    %c9 = arith.constant 9 : index
    %121 = memref.load %arg0[%c9] : memref<81xf32, #tpu.memory_space<smem>>
    %122 = vector.broadcast %121 : f32 to vector<2x1x14x14xf32>
    %123 = arith.mulf %122, %120 : vector<2x1x14x14xf32>
    %124 = arith.addf %111, %123 : vector<2x1x14x14xf32>
    %c36 = arith.constant 36 : index
    %125 = memref.load %arg0[%c36] : memref<81xf32, #tpu.memory_space<smem>>
    %126 = vector.broadcast %125 : f32 to vector<2x1x14x14xf32>
    %127 = arith.mulf %126, %120 : vector<2x1x14x14xf32>
    %128 = arith.addf %115, %127 : vector<2x1x14x14xf32>
    %c63 = arith.constant 63 : index
    %129 = memref.load %arg0[%c63] : memref<81xf32, #tpu.memory_space<smem>>
    %130 = vector.broadcast %129 : f32 to vector<2x1x14x14xf32>
    %131 = arith.mulf %130, %120 : vector<2x1x14x14xf32>
    %132 = arith.addf %119, %131 : vector<2x1x14x14xf32>
    %c0_42 = arith.constant 0 : index
    %c1_43 = arith.constant 1 : index
    %c0_44 = arith.constant 0 : index
    %c1_45 = arith.constant 1 : index
    %133 = vector.load %arg1[%c0_42, %c1_43, %c0_44, %c1_45] : memref<2x3x16x16xf32, #tpu.memory_space<vmem>>, vector<2x1x14x14xf32>
    %c10 = arith.constant 10 : index
    %134 = memref.load %arg0[%c10] : memref<81xf32, #tpu.memory_space<smem>>
    %135 = vector.broadcast %134 : f32 to vector<2x1x14x14xf32>
    %136 = arith.mulf %135, %133 : vector<2x1x14x14xf32>
    %137 = arith.addf %124, %136 : vector<2x1x14x14xf32>
    %c37 = arith.constant 37 : index
    %138 = memref.load %arg0[%c37] : memref<81xf32, #tpu.memory_space<smem>>
    %139 = vector.broadcast %138 : f32 to vector<2x1x14x14xf32>
    %140 = arith.mulf %139, %133 : vector<2x1x14x14xf32>
    %141 = arith.addf %128, %140 : vector<2x1x14x14xf32>
    %c64 = arith.constant 64 : index
    %142 = memref.load %arg0[%c64] : memref<81xf32, #tpu.memory_space<smem>>
    %143 = vector.broadcast %142 : f32 to vector<2x1x14x14xf32>
    %144 = arith.mulf %143, %133 : vector<2x1x14x14xf32>
    %145 = arith.addf %132, %144 : vector<2x1x14x14xf32>
    %c0_46 = arith.constant 0 : index
    %c1_47 = arith.constant 1 : index
    %c0_48 = arith.constant 0 : index
    %c2_49 = arith.constant 2 : index
    %146 = vector.load %arg1[%c0_46, %c1_47, %c0_48, %c2_49] : memref<2x3x16x16xf32, #tpu.memory_space<vmem>>, vector<2x1x14x14xf32>
    %c11 = arith.constant 11 : index
    %147 = memref.load %arg0[%c11] : memref<81xf32, #tpu.memory_space<smem>>
    %148 = vector.broadcast %147 : f32 to vector<2x1x14x14xf32>
    %149 = arith.mulf %148, %146 : vector<2x1x14x14xf32>
    %150 = arith.addf %137, %149 : vector<2x1x14x14xf32>
    %c38 = arith.constant 38 : index
    %151 = memref.load %arg0[%c38] : memref<81xf32, #tpu.memory_space<smem>>
    %152 = vector.broadcast %151 : f32 to vector<2x1x14x14xf32>
    %153 = arith.mulf %152, %146 : vector<2x1x14x14xf32>
    %154 = arith.addf %141, %153 : vector<2x1x14x14xf32>
    %c65 = arith.constant 65 : index
    %155 = memref.load %arg0[%c65] : memref<81xf32, #tpu.memory_space<smem>>
    %156 = vector.broadcast %155 : f32 to vector<2x1x14x14xf32>
    %157 = arith.mulf %156, %146 : vector<2x1x14x14xf32>
    %158 = arith.addf %145, %157 : vector<2x1x14x14xf32>
    %c0_50 = arith.constant 0 : index
    %c1_51 = arith.constant 1 : index
    %c1_52 = arith.constant 1 : index
    %c0_53 = arith.constant 0 : index
    %159 = vector.load %arg1[%c0_50, %c1_51, %c1_52, %c0_53] : memref<2x3x16x16xf32, #tpu.memory_space<vmem>>, vector<2x1x14x14xf32>
    %c12 = arith.constant 12 : index
    %160 = memref.load %arg0[%c12] : memref<81xf32, #tpu.memory_space<smem>>
    %161 = vector.broadcast %160 : f32 to vector<2x1x14x14xf32>
    %162 = arith.mulf %161, %159 : vector<2x1x14x14xf32>
    %163 = arith.addf %150, %162 : vector<2x1x14x14xf32>
    %c39 = arith.constant 39 : index
    %164 = memref.load %arg0[%c39] : memref<81xf32, #tpu.memory_space<smem>>
    %165 = vector.broadcast %164 : f32 to vector<2x1x14x14xf32>
    %166 = arith.mulf %165, %159 : vector<2x1x14x14xf32>
    %167 = arith.addf %154, %166 : vector<2x1x14x14xf32>
    %c66 = arith.constant 66 : index
    %168 = memref.load %arg0[%c66] : memref<81xf32, #tpu.memory_space<smem>>
    %169 = vector.broadcast %168 : f32 to vector<2x1x14x14xf32>
    %170 = arith.mulf %169, %159 : vector<2x1x14x14xf32>
    %171 = arith.addf %158, %170 : vector<2x1x14x14xf32>
    %c0_54 = arith.constant 0 : index
    %c1_55 = arith.constant 1 : index
    %c1_56 = arith.constant 1 : index
    %c1_57 = arith.constant 1 : index
    %172 = vector.load %arg1[%c0_54, %c1_55, %c1_56, %c1_57] : memref<2x3x16x16xf32, #tpu.memory_space<vmem>>, vector<2x1x14x14xf32>
    %c13 = arith.constant 13 : index
    %173 = memref.load %arg0[%c13] : memref<81xf32, #tpu.memory_space<smem>>
    %174 = vector.broadcast %173 : f32 to vector<2x1x14x14xf32>
    %175 = arith.mulf %174, %172 : vector<2x1x14x14xf32>
    %176 = arith.addf %163, %175 : vector<2x1x14x14xf32>
    %c40 = arith.constant 40 : index
    %177 = memref.load %arg0[%c40] : memref<81xf32, #tpu.memory_space<smem>>
    %178 = vector.broadcast %177 : f32 to vector<2x1x14x14xf32>
    %179 = arith.mulf %178, %172 : vector<2x1x14x14xf32>
    %180 = arith.addf %167, %179 : vector<2x1x14x14xf32>
    %c67 = arith.constant 67 : index
    %181 = memref.load %arg0[%c67] : memref<81xf32, #tpu.memory_space<smem>>
    %182 = vector.broadcast %181 : f32 to vector<2x1x14x14xf32>
    %183 = arith.mulf %182, %172 : vector<2x1x14x14xf32>
    %184 = arith.addf %171, %183 : vector<2x1x14x14xf32>
    %c0_58 = arith.constant 0 : index
    %c1_59 = arith.constant 1 : index
    %c1_60 = arith.constant 1 : index
    %c2_61 = arith.constant 2 : index
    %185 = vector.load %arg1[%c0_58, %c1_59, %c1_60, %c2_61] : memref<2x3x16x16xf32, #tpu.memory_space<vmem>>, vector<2x1x14x14xf32>
    %c14 = arith.constant 14 : index
    %186 = memref.load %arg0[%c14] : memref<81xf32, #tpu.memory_space<smem>>
    %187 = vector.broadcast %186 : f32 to vector<2x1x14x14xf32>
    %188 = arith.mulf %187, %185 : vector<2x1x14x14xf32>
    %189 = arith.addf %176, %188 : vector<2x1x14x14xf32>
    %c41 = arith.constant 41 : index
    %190 = memref.load %arg0[%c41] : memref<81xf32, #tpu.memory_space<smem>>
    %191 = vector.broadcast %190 : f32 to vector<2x1x14x14xf32>
    %192 = arith.mulf %191, %185 : vector<2x1x14x14xf32>
    %193 = arith.addf %180, %192 : vector<2x1x14x14xf32>
    %c68 = arith.constant 68 : index
    %194 = memref.load %arg0[%c68] : memref<81xf32, #tpu.memory_space<smem>>
    %195 = vector.broadcast %194 : f32 to vector<2x1x14x14xf32>
    %196 = arith.mulf %195, %185 : vector<2x1x14x14xf32>
    %197 = arith.addf %184, %196 : vector<2x1x14x14xf32>
    %c0_62 = arith.constant 0 : index
    %c1_63 = arith.constant 1 : index
    %c2_64 = arith.constant 2 : index
    %c0_65 = arith.constant 0 : index
    %198 = vector.load %arg1[%c0_62, %c1_63, %c2_64, %c0_65] : memref<2x3x16x16xf32, #tpu.memory_space<vmem>>, vector<2x1x14x14xf32>
    %c15 = arith.constant 15 : index
    %199 = memref.load %arg0[%c15] : memref<81xf32, #tpu.memory_space<smem>>
    %200 = vector.broadcast %199 : f32 to vector<2x1x14x14xf32>
    %201 = arith.mulf %200, %198 : vector<2x1x14x14xf32>
    %202 = arith.addf %189, %201 : vector<2x1x14x14xf32>
    %c42 = arith.constant 42 : index
    %203 = memref.load %arg0[%c42] : memref<81xf32, #tpu.memory_space<smem>>
    %204 = vector.broadcast %203 : f32 to vector<2x1x14x14xf32>
    %205 = arith.mulf %204, %198 : vector<2x1x14x14xf32>
    %206 = arith.addf %193, %205 : vector<2x1x14x14xf32>
    %c69 = arith.constant 69 : index
    %207 = memref.load %arg0[%c69] : memref<81xf32, #tpu.memory_space<smem>>
    %208 = vector.broadcast %207 : f32 to vector<2x1x14x14xf32>
    %209 = arith.mulf %208, %198 : vector<2x1x14x14xf32>
    %210 = arith.addf %197, %209 : vector<2x1x14x14xf32>
    %c0_66 = arith.constant 0 : index
    %c1_67 = arith.constant 1 : index
    %c2_68 = arith.constant 2 : index
    %c1_69 = arith.constant 1 : index
    %211 = vector.load %arg1[%c0_66, %c1_67, %c2_68, %c1_69] : memref<2x3x16x16xf32, #tpu.memory_space<vmem>>, vector<2x1x14x14xf32>
    %c16 = arith.constant 16 : index
    %212 = memref.load %arg0[%c16] : memref<81xf32, #tpu.memory_space<smem>>
    %213 = vector.broadcast %212 : f32 to vector<2x1x14x14xf32>
    %214 = arith.mulf %213, %211 : vector<2x1x14x14xf32>
    %215 = arith.addf %202, %214 : vector<2x1x14x14xf32>
    %c43 = arith.constant 43 : index
    %216 = memref.load %arg0[%c43] : memref<81xf32, #tpu.memory_space<smem>>
    %217 = vector.broadcast %216 : f32 to vector<2x1x14x14xf32>
    %218 = arith.mulf %217, %211 : vector<2x1x14x14xf32>
    %219 = arith.addf %206, %218 : vector<2x1x14x14xf32>
    %c70 = arith.constant 70 : index
    %220 = memref.load %arg0[%c70] : memref<81xf32, #tpu.memory_space<smem>>
    %221 = vector.broadcast %220 : f32 to vector<2x1x14x14xf32>
    %222 = arith.mulf %221, %211 : vector<2x1x14x14xf32>
    %223 = arith.addf %210, %222 : vector<2x1x14x14xf32>
    %c0_70 = arith.constant 0 : index
    %c1_71 = arith.constant 1 : index
    %c2_72 = arith.constant 2 : index
    %c2_73 = arith.constant 2 : index
    %224 = vector.load %arg1[%c0_70, %c1_71, %c2_72, %c2_73] : memref<2x3x16x16xf32, #tpu.memory_space<vmem>>, vector<2x1x14x14xf32>
    %c17 = arith.constant 17 : index
    %225 = memref.load %arg0[%c17] : memref<81xf32, #tpu.memory_space<smem>>
    %226 = vector.broadcast %225 : f32 to vector<2x1x14x14xf32>
    %227 = arith.mulf %226, %224 : vector<2x1x14x14xf32>
    %228 = arith.addf %215, %227 : vector<2x1x14x14xf32>
    %c44 = arith.constant 44 : index
    %229 = memref.load %arg0[%c44] : memref<81xf32, #tpu.memory_space<smem>>
    %230 = vector.broadcast %229 : f32 to vector<2x1x14x14xf32>
    %231 = arith.mulf %230, %224 : vector<2x1x14x14xf32>
    %232 = arith.addf %219, %231 : vector<2x1x14x14xf32>
    %c71 = arith.constant 71 : index
    %233 = memref.load %arg0[%c71] : memref<81xf32, #tpu.memory_space<smem>>
    %234 = vector.broadcast %233 : f32 to vector<2x1x14x14xf32>
    %235 = arith.mulf %234, %224 : vector<2x1x14x14xf32>
    %236 = arith.addf %223, %235 : vector<2x1x14x14xf32>
    %c0_74 = arith.constant 0 : index
    %c2_75 = arith.constant 2 : index
    %c0_76 = arith.constant 0 : index
    %c0_77 = arith.constant 0 : index
    %237 = vector.load %arg1[%c0_74, %c2_75, %c0_76, %c0_77] : memref<2x3x16x16xf32, #tpu.memory_space<vmem>>, vector<2x1x14x14xf32>
    %c18 = arith.constant 18 : index
    %238 = memref.load %arg0[%c18] : memref<81xf32, #tpu.memory_space<smem>>
    %239 = vector.broadcast %238 : f32 to vector<2x1x14x14xf32>
    %240 = arith.mulf %239, %237 : vector<2x1x14x14xf32>
    %241 = arith.addf %228, %240 : vector<2x1x14x14xf32>
    %c45 = arith.constant 45 : index
    %242 = memref.load %arg0[%c45] : memref<81xf32, #tpu.memory_space<smem>>
    %243 = vector.broadcast %242 : f32 to vector<2x1x14x14xf32>
    %244 = arith.mulf %243, %237 : vector<2x1x14x14xf32>
    %245 = arith.addf %232, %244 : vector<2x1x14x14xf32>
    %c72 = arith.constant 72 : index
    %246 = memref.load %arg0[%c72] : memref<81xf32, #tpu.memory_space<smem>>
    %247 = vector.broadcast %246 : f32 to vector<2x1x14x14xf32>
    %248 = arith.mulf %247, %237 : vector<2x1x14x14xf32>
    %249 = arith.addf %236, %248 : vector<2x1x14x14xf32>
    %c0_78 = arith.constant 0 : index
    %c2_79 = arith.constant 2 : index
    %c0_80 = arith.constant 0 : index
    %c1_81 = arith.constant 1 : index
    %250 = vector.load %arg1[%c0_78, %c2_79, %c0_80, %c1_81] : memref<2x3x16x16xf32, #tpu.memory_space<vmem>>, vector<2x1x14x14xf32>
    %c19 = arith.constant 19 : index
    %251 = memref.load %arg0[%c19] : memref<81xf32, #tpu.memory_space<smem>>
    %252 = vector.broadcast %251 : f32 to vector<2x1x14x14xf32>
    %253 = arith.mulf %252, %250 : vector<2x1x14x14xf32>
    %254 = arith.addf %241, %253 : vector<2x1x14x14xf32>
    %c46 = arith.constant 46 : index
    %255 = memref.load %arg0[%c46] : memref<81xf32, #tpu.memory_space<smem>>
    %256 = vector.broadcast %255 : f32 to vector<2x1x14x14xf32>
    %257 = arith.mulf %256, %250 : vector<2x1x14x14xf32>
    %258 = arith.addf %245, %257 : vector<2x1x14x14xf32>
    %c73 = arith.constant 73 : index
    %259 = memref.load %arg0[%c73] : memref<81xf32, #tpu.memory_space<smem>>
    %260 = vector.broadcast %259 : f32 to vector<2x1x14x14xf32>
    %261 = arith.mulf %260, %250 : vector<2x1x14x14xf32>
    %262 = arith.addf %249, %261 : vector<2x1x14x14xf32>
    %c0_82 = arith.constant 0 : index
    %c2_83 = arith.constant 2 : index
    %c0_84 = arith.constant 0 : index
    %c2_85 = arith.constant 2 : index
    %263 = vector.load %arg1[%c0_82, %c2_83, %c0_84, %c2_85] : memref<2x3x16x16xf32, #tpu.memory_space<vmem>>, vector<2x1x14x14xf32>
    %c20 = arith.constant 20 : index
    %264 = memref.load %arg0[%c20] : memref<81xf32, #tpu.memory_space<smem>>
    %265 = vector.broadcast %264 : f32 to vector<2x1x14x14xf32>
    %266 = arith.mulf %265, %263 : vector<2x1x14x14xf32>
    %267 = arith.addf %254, %266 : vector<2x1x14x14xf32>
    %c47 = arith.constant 47 : index
    %268 = memref.load %arg0[%c47] : memref<81xf32, #tpu.memory_space<smem>>
    %269 = vector.broadcast %268 : f32 to vector<2x1x14x14xf32>
    %270 = arith.mulf %269, %263 : vector<2x1x14x14xf32>
    %271 = arith.addf %258, %270 : vector<2x1x14x14xf32>
    %c74 = arith.constant 74 : index
    %272 = memref.load %arg0[%c74] : memref<81xf32, #tpu.memory_space<smem>>
    %273 = vector.broadcast %272 : f32 to vector<2x1x14x14xf32>
    %274 = arith.mulf %273, %263 : vector<2x1x14x14xf32>
    %275 = arith.addf %262, %274 : vector<2x1x14x14xf32>
    %c0_86 = arith.constant 0 : index
    %c2_87 = arith.constant 2 : index
    %c1_88 = arith.constant 1 : index
    %c0_89 = arith.constant 0 : index
    %276 = vector.load %arg1[%c0_86, %c2_87, %c1_88, %c0_89] : memref<2x3x16x16xf32, #tpu.memory_space<vmem>>, vector<2x1x14x14xf32>
    %c21 = arith.constant 21 : index
    %277 = memref.load %arg0[%c21] : memref<81xf32, #tpu.memory_space<smem>>
    %278 = vector.broadcast %277 : f32 to vector<2x1x14x14xf32>
    %279 = arith.mulf %278, %276 : vector<2x1x14x14xf32>
    %280 = arith.addf %267, %279 : vector<2x1x14x14xf32>
    %c48 = arith.constant 48 : index
    %281 = memref.load %arg0[%c48] : memref<81xf32, #tpu.memory_space<smem>>
    %282 = vector.broadcast %281 : f32 to vector<2x1x14x14xf32>
    %283 = arith.mulf %282, %276 : vector<2x1x14x14xf32>
    %284 = arith.addf %271, %283 : vector<2x1x14x14xf32>
    %c75 = arith.constant 75 : index
    %285 = memref.load %arg0[%c75] : memref<81xf32, #tpu.memory_space<smem>>
    %286 = vector.broadcast %285 : f32 to vector<2x1x14x14xf32>
    %287 = arith.mulf %286, %276 : vector<2x1x14x14xf32>
    %288 = arith.addf %275, %287 : vector<2x1x14x14xf32>
    %c0_90 = arith.constant 0 : index
    %c2_91 = arith.constant 2 : index
    %c1_92 = arith.constant 1 : index
    %c1_93 = arith.constant 1 : index
    %289 = vector.load %arg1[%c0_90, %c2_91, %c1_92, %c1_93] : memref<2x3x16x16xf32, #tpu.memory_space<vmem>>, vector<2x1x14x14xf32>
    %c22 = arith.constant 22 : index
    %290 = memref.load %arg0[%c22] : memref<81xf32, #tpu.memory_space<smem>>
    %291 = vector.broadcast %290 : f32 to vector<2x1x14x14xf32>
    %292 = arith.mulf %291, %289 : vector<2x1x14x14xf32>
    %293 = arith.addf %280, %292 : vector<2x1x14x14xf32>
    %c49 = arith.constant 49 : index
    %294 = memref.load %arg0[%c49] : memref<81xf32, #tpu.memory_space<smem>>
    %295 = vector.broadcast %294 : f32 to vector<2x1x14x14xf32>
    %296 = arith.mulf %295, %289 : vector<2x1x14x14xf32>
    %297 = arith.addf %284, %296 : vector<2x1x14x14xf32>
    %c76 = arith.constant 76 : index
    %298 = memref.load %arg0[%c76] : memref<81xf32, #tpu.memory_space<smem>>
    %299 = vector.broadcast %298 : f32 to vector<2x1x14x14xf32>
    %300 = arith.mulf %299, %289 : vector<2x1x14x14xf32>
    %301 = arith.addf %288, %300 : vector<2x1x14x14xf32>
    %c0_94 = arith.constant 0 : index
    %c2_95 = arith.constant 2 : index
    %c1_96 = arith.constant 1 : index
    %c2_97 = arith.constant 2 : index
    %302 = vector.load %arg1[%c0_94, %c2_95, %c1_96, %c2_97] : memref<2x3x16x16xf32, #tpu.memory_space<vmem>>, vector<2x1x14x14xf32>
    %c23 = arith.constant 23 : index
    %303 = memref.load %arg0[%c23] : memref<81xf32, #tpu.memory_space<smem>>
    %304 = vector.broadcast %303 : f32 to vector<2x1x14x14xf32>
    %305 = arith.mulf %304, %302 : vector<2x1x14x14xf32>
    %306 = arith.addf %293, %305 : vector<2x1x14x14xf32>
    %c50 = arith.constant 50 : index
    %307 = memref.load %arg0[%c50] : memref<81xf32, #tpu.memory_space<smem>>
    %308 = vector.broadcast %307 : f32 to vector<2x1x14x14xf32>
    %309 = arith.mulf %308, %302 : vector<2x1x14x14xf32>
    %310 = arith.addf %297, %309 : vector<2x1x14x14xf32>
    %c77 = arith.constant 77 : index
    %311 = memref.load %arg0[%c77] : memref<81xf32, #tpu.memory_space<smem>>
    %312 = vector.broadcast %311 : f32 to vector<2x1x14x14xf32>
    %313 = arith.mulf %312, %302 : vector<2x1x14x14xf32>
    %314 = arith.addf %301, %313 : vector<2x1x14x14xf32>
    %c0_98 = arith.constant 0 : index
    %c2_99 = arith.constant 2 : index
    %c2_100 = arith.constant 2 : index
    %c0_101 = arith.constant 0 : index
    %315 = vector.load %arg1[%c0_98, %c2_99, %c2_100, %c0_101] : memref<2x3x16x16xf32, #tpu.memory_space<vmem>>, vector<2x1x14x14xf32>
    %c24 = arith.constant 24 : index
    %316 = memref.load %arg0[%c24] : memref<81xf32, #tpu.memory_space<smem>>
    %317 = vector.broadcast %316 : f32 to vector<2x1x14x14xf32>
    %318 = arith.mulf %317, %315 : vector<2x1x14x14xf32>
    %319 = arith.addf %306, %318 : vector<2x1x14x14xf32>
    %c51 = arith.constant 51 : index
    %320 = memref.load %arg0[%c51] : memref<81xf32, #tpu.memory_space<smem>>
    %321 = vector.broadcast %320 : f32 to vector<2x1x14x14xf32>
    %322 = arith.mulf %321, %315 : vector<2x1x14x14xf32>
    %323 = arith.addf %310, %322 : vector<2x1x14x14xf32>
    %c78 = arith.constant 78 : index
    %324 = memref.load %arg0[%c78] : memref<81xf32, #tpu.memory_space<smem>>
    %325 = vector.broadcast %324 : f32 to vector<2x1x14x14xf32>
    %326 = arith.mulf %325, %315 : vector<2x1x14x14xf32>
    %327 = arith.addf %314, %326 : vector<2x1x14x14xf32>
    %c0_102 = arith.constant 0 : index
    %c2_103 = arith.constant 2 : index
    %c2_104 = arith.constant 2 : index
    %c1_105 = arith.constant 1 : index
    %328 = vector.load %arg1[%c0_102, %c2_103, %c2_104, %c1_105] : memref<2x3x16x16xf32, #tpu.memory_space<vmem>>, vector<2x1x14x14xf32>
    %c25 = arith.constant 25 : index
    %329 = memref.load %arg0[%c25] : memref<81xf32, #tpu.memory_space<smem>>
    %330 = vector.broadcast %329 : f32 to vector<2x1x14x14xf32>
    %331 = arith.mulf %330, %328 : vector<2x1x14x14xf32>
    %332 = arith.addf %319, %331 : vector<2x1x14x14xf32>
    %c52 = arith.constant 52 : index
    %333 = memref.load %arg0[%c52] : memref<81xf32, #tpu.memory_space<smem>>
    %334 = vector.broadcast %333 : f32 to vector<2x1x14x14xf32>
    %335 = arith.mulf %334, %328 : vector<2x1x14x14xf32>
    %336 = arith.addf %323, %335 : vector<2x1x14x14xf32>
    %c79 = arith.constant 79 : index
    %337 = memref.load %arg0[%c79] : memref<81xf32, #tpu.memory_space<smem>>
    %338 = vector.broadcast %337 : f32 to vector<2x1x14x14xf32>
    %339 = arith.mulf %338, %328 : vector<2x1x14x14xf32>
    %340 = arith.addf %327, %339 : vector<2x1x14x14xf32>
    %c0_106 = arith.constant 0 : index
    %c2_107 = arith.constant 2 : index
    %c2_108 = arith.constant 2 : index
    %c2_109 = arith.constant 2 : index
    %341 = vector.load %arg1[%c0_106, %c2_107, %c2_108, %c2_109] : memref<2x3x16x16xf32, #tpu.memory_space<vmem>>, vector<2x1x14x14xf32>
    %c26 = arith.constant 26 : index
    %342 = memref.load %arg0[%c26] : memref<81xf32, #tpu.memory_space<smem>>
    %343 = vector.broadcast %342 : f32 to vector<2x1x14x14xf32>
    %344 = arith.mulf %343, %341 : vector<2x1x14x14xf32>
    %345 = arith.addf %332, %344 : vector<2x1x14x14xf32>
    %c53 = arith.constant 53 : index
    %346 = memref.load %arg0[%c53] : memref<81xf32, #tpu.memory_space<smem>>
    %347 = vector.broadcast %346 : f32 to vector<2x1x14x14xf32>
    %348 = arith.mulf %347, %341 : vector<2x1x14x14xf32>
    %349 = arith.addf %336, %348 : vector<2x1x14x14xf32>
    %c80 = arith.constant 80 : index
    %350 = memref.load %arg0[%c80] : memref<81xf32, #tpu.memory_space<smem>>
    %351 = vector.broadcast %350 : f32 to vector<2x1x14x14xf32>
    %352 = arith.mulf %351, %341 : vector<2x1x14x14xf32>
    %353 = arith.addf %340, %352 : vector<2x1x14x14xf32>
    %cst_110 = arith.constant 0.000000e+00 : f32
    %354 = vector.broadcast %cst_110 : f32 to vector<2x1x14x14xf32>
    %355 = arith.maximumf %345, %354 : vector<2x1x14x14xf32>
    %c0_111 = arith.constant 0 : index
    %c0_112 = arith.constant 0 : index
    %c0_113 = arith.constant 0 : index
    %c0_114 = arith.constant 0 : index
    %356 = vector.load %arg2[%c0_111, %c0_112, %c0_113, %c0_114] : memref<2x3x14x14xf32, #tpu.memory_space<vmem>>, vector<2x1x14x14xf32>
    tpu.vector_store %arg2[%c0_111, %c0_112, %c0_113, %c0_114], %355 {strides = array<i32>} : memref<2x3x14x14xf32, #tpu.memory_space<vmem>>, vector<2x1x14x14xf32>,
    %cst_115 = arith.constant 0.000000e+00 : f32
    %357 = vector.broadcast %cst_115 : f32 to vector<2x1x14x14xf32>
    %358 = arith.maximumf %349, %357 : vector<2x1x14x14xf32>
    %c0_116 = arith.constant 0 : index
    %c1_117 = arith.constant 1 : index
    %c0_118 = arith.constant 0 : index
    %c0_119 = arith.constant 0 : index
    %359 = vector.load %arg2[%c0_116, %c1_117, %c0_118, %c0_119] : memref<2x3x14x14xf32, #tpu.memory_space<vmem>>, vector<2x1x14x14xf32>
    tpu.vector_store %arg2[%c0_116, %c1_117, %c0_118, %c0_119], %358 {strides = array<i32>} : memref<2x3x14x14xf32, #tpu.memory_space<vmem>>, vector<2x1x14x14xf32>,
    %cst_120 = arith.constant 0.000000e+00 : f32
    %360 = vector.broadcast %cst_120 : f32 to vector<2x1x14x14xf32>
    %361 = arith.maximumf %353, %360 : vector<2x1x14x14xf32>
    %c0_121 = arith.constant 0 : index
    %c2_122 = arith.constant 2 : index
    %c0_123 = arith.constant 0 : index
    %c0_124 = arith.constant 0 : index
    %362 = vector.load %arg2[%c0_121, %c2_122, %c0_123, %c0_124] : memref<2x3x14x14xf32, #tpu.memory_space<vmem>>, vector<2x1x14x14xf32>
    tpu.vector_store %arg2[%c0_121, %c2_122, %c0_123, %c0_124], %361 {strides = array<i32>} : memref<2x3x14x14xf32, #tpu.memory_space<vmem>>, vector<2x1x14x14xf32>,
    return
  }
}

</mosaic_0001>

<llo_original>
// kernel: tpu_custom_call.1
$region0: #{tpu_custom_call.1}
  #allocation0 [shape = 'u32[]', space=smem, size = 0x4, offset = 0x4, fixed_abs, tag = 'smem constant byte address 0x4 - core index']
  #allocation1 [shape = 'u32[72,128]{1,0:T(1,128)}', space=vmem, size = 0x9000, scoped, tag = 'internal scratch']
  %s0 = inlined_call_operand.hbm [shape: f32[81], index: 0, kind: input, shape index: {}]
  %s1 = inlined_call_operand.hbm [shape: f32[2,3,16,16], index: 1, kind: input, shape index: {}]
  %s2 = inlined_call_operand.vmem [shape: f32[2,3,14,14], index: 2, kind: output, shape index: {}]
  %s3 = sld [smem:[#allocation0]]
  $region26: #{tpu_custom_call.1} parent=0
    _
  %s5 = ssub.s32 1, %s3
  %s6 = scalar_select 0, %s5, %s3
  $region1: #{tpu_custom_call.1} parent=0
    #allocation2 [shape = 'u8[512]{0}', space=smem, size = 0x200, scoped, tag = 'input window, operand 0, single buffered']
    #allocation3 [shape = 's32[1]{0}', space=sflag, size = 0x4, scoped, tag = 'scoped memory for tpu_custom_call.1']
    #allocation4 [shape = 's32[1]{0}', space=sflag, size = 0x4, scoped, tag = 'scoped memory for tpu_custom_call.1']
    #allocation5 [shape = 'u8[49152]{0}', space=vmem, size = 0xc000, scoped, tag = 'input window, operand 1, single buffered']
    %7 = vsyncpa [#allocation4], 0
    %8 = vsyncpa [#allocation3], 0
    // Predicated region
    $region2: #{tpu_custom_call.1} parent=1 // pred_check
      _
    $region3: #{tpu_custom_call.1} parent=1 // pred_check_branch
      %10 = sbr.rel (0) target = $region5
    $region4: #{tpu_custom_call.1} parent=1 // pred_region
      %12 = vsyncadd [#allocation4], 0
      %s14 = sshll.u32 %s0, 4
      %s15 = int_to_ptr.hbm [resolvable:$true] %s14
      %17 = dma.hbm_to_smem %s15, 16, [#allocation2], [#allocation4]
    $region5: #{tpu_custom_call.1} parent=1 // pred_fallthru
      _
    // Predicated region
    $region6: #{tpu_custom_call.1} parent=1 // pred_check
      _
    $region7: #{tpu_custom_call.1} parent=1 // pred_check_branch
      %19 = sbr.rel (0) target = $region9
    $region8: #{tpu_custom_call.1} parent=1 // pred_region
      %21 = vsyncadd [#allocation3], 0
      %s22 = sshll.u32 %s1, 4
      %s23 = int_to_ptr.hbm [resolvable:$true] %s22
      %s24 = sshll.u32 [#allocation5], 4
      %s25 = int_to_ptr.vmem [resolvable:$true] %s24
      %30 = dma.hbm_to_vmem [thread:$0]  %s23, 1536, %s25, [#allocation3], 128, 128, 8
    $region9: #{tpu_custom_call.1} parent=1 // pred_fallthru
      _
    // Predicated region
    $region10: #{tpu_custom_call.1} parent=1 // pred_check
      _
    $region11: #{tpu_custom_call.1} parent=1 // pred_check_branch
      %32 = sbr.rel (0) target = $region13
    $region12: #{tpu_custom_call.1} parent=1 // pred_region
      %34 = dma.done [#allocation4], 16
    $region13: #{tpu_custom_call.1} parent=1 // pred_fallthru
      _
    // Predicated region
    $region14: #{tpu_custom_call.1} parent=1 // pred_check
      _
    $region15: #{tpu_custom_call.1} parent=1 // pred_check_branch
      %36 = sbr.rel (0) target = $region17
    $region16: #{tpu_custom_call.1} parent=1 // pred_region
      %38 = dma.done [#allocation3], 1536
    $region17: #{tpu_custom_call.1} parent=1 // pred_fallthru
      _
    %39 = sfence
    %v40 = vld [vmem:[#allocation5] sm:$0xff]
    %v41 = vld [vmem:[#allocation5 + $0x8] sm:$0x3f]
    %v42 = vld [vmem:[#allocation5 + $0x30] sm:$0xff]
    %v43 = vld [vmem:[#allocation5 + $0x38] sm:$0x3f]
    %s44 = sld [smem:[#allocation2]]
    %v45 = vstv %s44
    %v46 = vmul.f32 %v45, %v40
    %v47 = vmul.f32 %v45, %v41
    %v48 = vmul.f32 %v45, %v42
    %v49 = vmul.f32 %v45, %v43
    %v50 = vadd.f32 %v46, 0.0
    %v51 = vadd.f32 %v47, 0.0
    %v52 = vadd.f32 %v48, 0.0
    %v53 = vadd.f32 %v49, 0.0
    %s54 = sld [smem:[#allocation2 + $0x1b]]
    %v55 = vstv %s54
    %v56 = vmul.f32 %v55, %v40
    %v57 = vmul.f32 %v55, %v41
    %v58 = vmul.f32 %v55, %v42
    %v59 = vmul.f32 %v55, %v43
    %v60 = vadd.f32 %v56, 0.0
    %v61 = vadd.f32 %v57, 0.0
    %v62 = vadd.f32 %v58, 0.0
    %v63 = vadd.f32 %v59, 0.0
    %s64 = sld [smem:[#allocation2 + $0x36]]
    %v65 = vstv %s64
    %v66 = vmul.f32 %v65, %v40
    %v67 = vmul.f32 %v65, %v41
    %v68 = vmul.f32 %v65, %v42
    %v69 = vmul.f32 %v65, %v43
    %v70 = vadd.f32 %v66, 0.0
    %v71 = vadd.f32 %v67, 0.0
    %v72 = vadd.f32 %v68, 0.0
    %v73 = vadd.f32 %v69, 0.0
    %s74 = sld [smem:[#allocation2 + $0x1]]
    %v75 = vstv %s74
    %v76 = vmul.f32 %v75, %v40
    %v77 = vmul.f32 %v75, %v41
    %v78 = vmul.f32 %v75, %v42
    %v79 = vmul.f32 %v75, %v43
    %84 = vrot.lane.b32.xlu0 %v76, 127
    %v85 = vpop.permute.xlu0 %84
    %86 = vrot.lane.b32.xlu0 %v77, 127
    %v87 = vpop.permute.xlu0 %86
    %88 = vrot.lane.b32.xlu0 %v78, 127
    %v89 = vpop.permute.xlu0 %88
    %90 = vrot.lane.b32.xlu0 %v79, 127
    %v91 = vpop.permute.xlu0 %90
    %v96 = vadd.f32 %v50, %v85
    %v97 = vadd.f32 %v51, %v87
    %v98 = vadd.f32 %v52, %v89
    %v99 = vadd.f32 %v53, %v91
    %s100 = sld [smem:[#allocation2 + $0x1c]]
    %v101 = vstv %s100
    %v102 = vmul.f32 %v101, %v40
    %v103 = vmul.f32 %v101, %v41
    %v104 = vmul.f32 %v101, %v42
    %v105 = vmul.f32 %v101, %v43
    %110 = vrot.lane.b32.xlu0 %v102, 127
    %v111 = vpop.permute.xlu0 %110
    %112 = vrot.lane.b32.xlu0 %v103, 127
    %v113 = vpop.permute.xlu0 %112
    %114 = vrot.lane.b32.xlu0 %v104, 127
    %v115 = vpop.permute.xlu0 %114
    %116 = vrot.lane.b32.xlu0 %v105, 127
    %v117 = vpop.permute.xlu0 %116
    %v122 = vadd.f32 %v60, %v111
    %v123 = vadd.f32 %v61, %v113
    %v124 = vadd.f32 %v62, %v115
    %v125 = vadd.f32 %v63, %v117
    %s126 = sld [smem:[#allocation2 + $0x37]]
    %v127 = vstv %s126
    %v128 = vmul.f32 %v127, %v40
    %v129 = vmul.f32 %v127, %v41
    %v130 = vmul.f32 %v127, %v42
    %v131 = vmul.f32 %v127, %v43
    %136 = vrot.lane.b32.xlu0 %v128, 127
    %v137 = vpop.permute.xlu0 %136
    %138 = vrot.lane.b32.xlu0 %v129, 127
    %v139 = vpop.permute.xlu0 %138
    %140 = vrot.lane.b32.xlu0 %v130, 127
    %v141 = vpop.permute.xlu0 %140
    %142 = vrot.lane.b32.xlu0 %v131, 127
    %v143 = vpop.permute.xlu0 %142
    %v148 = vadd.f32 %v70, %v137
    %v149 = vadd.f32 %v71, %v139
    %v150 = vadd.f32 %v72, %v141
    %v151 = vadd.f32 %v73, %v143
    %s152 = sld [smem:[#allocation2 + $0x2]]
    %v153 = vstv %s152
    %v154 = vmul.f32 %v153, %v40
    %v155 = vmul.f32 %v153, %v41
    %v156 = vmul.f32 %v153, %v42
    %v157 = vmul.f32 %v153, %v43
    %162 = vrot.lane.b32.xlu0 %v154, 126
    %v163 = vpop.permute.xlu0 %162
    %164 = vrot.lane.b32.xlu0 %v155, 126
    %v165 = vpop.permute.xlu0 %164
    %166 = vrot.lane.b32.xlu0 %v156, 126
    %v167 = vpop.permute.xlu0 %166
    %168 = vrot.lane.b32.xlu0 %v157, 126
    %v169 = vpop.permute.xlu0 %168
    %v174 = vadd.f32 %v96, %v163
    %v175 = vadd.f32 %v97, %v165
    %v176 = vadd.f32 %v98, %v167
    %v177 = vadd.f32 %v99, %v169
    %s178 = sld [smem:[#allocation2 + $0x1d]]
    %v179 = vstv %s178
    %v180 = vmul.f32 %v179, %v40
    %v181 = vmul.f32 %v179, %v41
    %v182 = vmul.f32 %v179, %v42
    %v183 = vmul.f32 %v179, %v43
    %188 = vrot.lane.b32.xlu0 %v180, 126
    %v189 = vpop.permute.xlu0 %188
    %190 = vrot.lane.b32.xlu0 %v181, 126
    %v191 = vpop.permute.xlu0 %190
    %192 = vrot.lane.b32.xlu0 %v182, 126
    %v193 = vpop.permute.xlu0 %192
    %194 = vrot.lane.b32.xlu0 %v183, 126
    %v195 = vpop.permute.xlu0 %194
    %v200 = vadd.f32 %v122, %v189
    %v201 = vadd.f32 %v123, %v191
    %v202 = vadd.f32 %v124, %v193
    %v203 = vadd.f32 %v125, %v195
    %s204 = sld [smem:[#allocation2 + $0x38]]
    %v205 = vstv %s204
    %v206 = vmul.f32 %v205, %v40
    %v207 = vmul.f32 %v205, %v41
    %v208 = vmul.f32 %v205, %v42
    %v209 = vmul.f32 %v205, %v43
    %214 = vrot.lane.b32.xlu0 %v206, 126
    %v215 = vpop.permute.xlu0 %214
    %216 = vrot.lane.b32.xlu0 %v207, 126
    %v217 = vpop.permute.xlu0 %216
    %218 = vrot.lane.b32.xlu0 %v208, 126
    %v219 = vpop.permute.xlu0 %218
    %220 = vrot.lane.b32.xlu0 %v209, 126
    %v221 = vpop.permute.xlu0 %220
    %v226 = vadd.f32 %v148, %v215
    %v227 = vadd.f32 %v149, %v217
    %v228 = vadd.f32 %v150, %v219
    %v229 = vadd.f32 %v151, %v221
    %v230 = vld [vmem:[#allocation5 + $0x1] sm:$0xff]
    %v231 = vld [vmem:[#allocation5 + $0x9] sm:$0x3f]
    %v232 = vld [vmem:[#allocation5 + $0x31] sm:$0xff]
    %v233 = vld [vmem:[#allocation5 + $0x39] sm:$0x3f]
    %s234 = sld [smem:[#allocation2 + $0x3]]
    %v235 = vstv %s234
    %v236 = vmul.f32 %v235, %v230
    %v237 = vmul.f32 %v235, %v231
    %v238 = vmul.f32 %v235, %v232
    %v239 = vmul.f32 %v235, %v233
    %v240 = vadd.f32 %v174, %v236
    %v241 = vadd.f32 %v175, %v237
    %v242 = vadd.f32 %v176, %v238
    %v243 = vadd.f32 %v177, %v239
    %s244 = sld [smem:[#allocation2 + $0x1e]]
    %v245 = vstv %s244
    %v246 = vmul.f32 %v245, %v230
    %v247 = vmul.f32 %v245, %v231
    %v248 = vmul.f32 %v245, %v232
    %v249 = vmul.f32 %v245, %v233
    %v250 = vadd.f32 %v200, %v246
    %v251 = vadd.f32 %v201, %v247
    %v252 = vadd.f32 %v202, %v248
    %v253 = vadd.f32 %v203, %v249
    %s254 = sld [smem:[#allocation2 + $0x39]]
    %v255 = vstv %s254
    %v256 = vmul.f32 %v255, %v230
    %v257 = vmul.f32 %v255, %v231
    %v258 = vmul.f32 %v255, %v232
    %v259 = vmul.f32 %v255, %v233
    %v260 = vadd.f32 %v226, %v256
    %v261 = vadd.f32 %v227, %v257
    %v262 = vadd.f32 %v228, %v258
    %v263 = vadd.f32 %v229, %v259
    %s264 = sld [smem:[#allocation2 + $0x4]]
    %v265 = vstv %s264
    %v266 = vmul.f32 %v265, %v230
    %v267 = vmul.f32 %v265, %v231
    %v268 = vmul.f32 %v265, %v232
    %v269 = vmul.f32 %v265, %v233
    %274 = vrot.lane.b32.xlu0 %v266, 127
    %v275 = vpop.permute.xlu0 %274
    %276 = vrot.lane.b32.xlu0 %v267, 127
    %v277 = vpop.permute.xlu0 %276
    %278 = vrot.lane.b32.xlu0 %v268, 127
    %v279 = vpop.permute.xlu0 %278
    %280 = vrot.lane.b32.xlu0 %v269, 127
    %v281 = vpop.permute.xlu0 %280
    %v286 = vadd.f32 %v240, %v275
    %v287 = vadd.f32 %v241, %v277
    %v288 = vadd.f32 %v242, %v279
    %v289 = vadd.f32 %v243, %v281
    %s290 = sld [smem:[#allocation2 + $0x1f]]
    %v291 = vstv %s290
    %v292 = vmul.f32 %v291, %v230
    %v293 = vmul.f32 %v291, %v231
    %v294 = vmul.f32 %v291, %v232
    %v295 = vmul.f32 %v291, %v233
    %300 = vrot.lane.b32.xlu0 %v292, 127
    %v301 = vpop.permute.xlu0 %300
    %302 = vrot.lane.b32.xlu0 %v293, 127
    %v303 = vpop.permute.xlu0 %302
    %304 = vrot.lane.b32.xlu0 %v294, 127
    %v305 = vpop.permute.xlu0 %304
    %306 = vrot.lane.b32.xlu0 %v295, 127
    %v307 = vpop.permute.xlu0 %306
    %v312 = vadd.f32 %v250, %v301
    %v313 = vadd.f32 %v251, %v303
    %v314 = vadd.f32 %v252, %v305
    %v315 = vadd.f32 %v253, %v307
    %s316 = sld [smem:[#allocation2 + $0x3a]]
    %v317 = vstv %s316
    %v318 = vmul.f32 %v317, %v230
    %v319 = vmul.f32 %v317, %v231
    %v320 = vmul.f32 %v317, %v232
    %v321 = vmul.f32 %v317, %v233
    %326 = vrot.lane.b32.xlu0 %v318, 127
    %v327 = vpop.permute.xlu0 %326
    %328 = vrot.lane.b32.xlu0 %v319, 127
    %v329 = vpop.permute.xlu0 %328
    %330 = vrot.lane.b32.xlu0 %v320, 127
    %v331 = vpop.permute.xlu0 %330
    %332 = vrot.lane.b32.xlu0 %v321, 127
    %v333 = vpop.permute.xlu0 %332
    %v338 = vadd.f32 %v260, %v327
    %v339 = vadd.f32 %v261, %v329
    %v340 = vadd.f32 %v262, %v331
    %v341 = vadd.f32 %v263, %v333
    %s342 = sld [smem:[#allocation2 + $0x5]]
    %v343 = vstv %s342
    %v344 = vmul.f32 %v343, %v230
    %v345 = vmul.f32 %v343, %v231
    %v346 = vmul.f32 %v343, %v232
    %v347 = vmul.f32 %v343, %v233
    %352 = vrot.lane.b32.xlu0 %v344, 126
    %v353 = vpop.permute.xlu0 %352
    %354 = vrot.lane.b32.xlu0 %v345, 126
    %v355 = vpop.permute.xlu0 %354
    %356 = vrot.lane.b32.xlu0 %v346, 126
    %v357 = vpop.permute.xlu0 %356
    %358 = vrot.lane.b32.xlu0 %v347, 126
    %v359 = vpop.permute.xlu0 %358
    %v364 = vadd.f32 %v286, %v353
    %v365 = vadd.f32 %v287, %v355
    %v366 = vadd.f32 %v288, %v357
    %v367 = vadd.f32 %v289, %v359
    %s368 = sld [smem:[#allocation2 + $0x20]]
    %v369 = vstv %s368
    %v370 = vmul.f32 %v369, %v230
    %v371 = vmul.f32 %v369, %v231
    %v372 = vmul.f32 %v369, %v232
    %v373 = vmul.f32 %v369, %v233
    %378 = vrot.lane.b32.xlu0 %v370, 126
    %v379 = vpop.permute.xlu0 %378
    %380 = vrot.lane.b32.xlu0 %v371, 126
    %v381 = vpop.permute.xlu0 %380
    %382 = vrot.lane.b32.xlu0 %v372, 126
    %v383 = vpop.permute.xlu0 %382
    %384 = vrot.lane.b32.xlu0 %v373, 126
    %v385 = vpop.permute.xlu0 %384
    %v390 = vadd.f32 %v312, %v379
    %v391 = vadd.f32 %v313, %v381
    %v392 = vadd.f32 %v314, %v383
    %v393 = vadd.f32 %v315, %v385
    %s394 = sld [smem:[#allocation2 + $0x3b]]
    %v395 = vstv %s394
    %v396 = vmul.f32 %v395, %v230
    %v397 = vmul.f32 %v395, %v231
    %v398 = vmul.f32 %v395, %v232
    %v399 = vmul.f32 %v395, %v233
    %404 = vrot.lane.b32.xlu0 %v396, 126
    %v405 = vpop.permute.xlu0 %404
    %406 = vrot.lane.b32.xlu0 %v397, 126
    %v407 = vpop.permute.xlu0 %406
    %408 = vrot.lane.b32.xlu0 %v398, 126
    %v409 = vpop.permute.xlu0 %408
    %410 = vrot.lane.b32.xlu0 %v399, 126
    %v411 = vpop.permute.xlu0 %410
    %v416 = vadd.f32 %v338, %v405
    %v417 = vadd.f32 %v339, %v407
    %v418 = vadd.f32 %v340, %v409
    %v419 = vadd.f32 %v341, %v411
    %v420 = vld [vmem:[#allocation5 + $0x2] sm:$0xff]
    %v421 = vld [vmem:[#allocation5 + $0xa] sm:$0x3f]
    %v422 = vld [vmem:[#allocation5 + $0x32] sm:$0xff]
    %v423 = vld [vmem:[#allocation5 + $0x3a] sm:$0x3f]
    %s424 = sld [smem:[#allocation2 + $0x6]]
    %v425 = vstv %s424
    %v426 = vmul.f32 %v425, %v420
    %v427 = vmul.f32 %v425, %v421
    %v428 = vmul.f32 %v425, %v422
    %v429 = vmul.f32 %v425, %v423
    %v430 = vadd.f32 %v364, %v426
    %v431 = vadd.f32 %v365, %v427
    %v432 = vadd.f32 %v366, %v428
    %v433 = vadd.f32 %v367, %v429
    %s434 = sld [smem:[#allocation2 + $0x21]]
    %v435 = vstv %s434
    %v436 = vmul.f32 %v435, %v420
    %v437 = vmul.f32 %v435, %v421
    %v438 = vmul.f32 %v435, %v422
    %v439 = vmul.f32 %v435, %v423
    %v440 = vadd.f32 %v390, %v436
    %v441 = vadd.f32 %v391, %v437
    %v442 = vadd.f32 %v392, %v438
    %v443 = vadd.f32 %v393, %v439
    %s444 = sld [smem:[#allocation2 + $0x3c]]
    %v445 = vstv %s444
    %v446 = vmul.f32 %v445, %v420
    %v447 = vmul.f32 %v445, %v421
    %v448 = vmul.f32 %v445, %v422
    %v449 = vmul.f32 %v445, %v423
    %v450 = vadd.f32 %v416, %v446
    %v451 = vadd.f32 %v417, %v447
    %v452 = vadd.f32 %v418, %v448
    %v453 = vadd.f32 %v419, %v449
    %s454 = sld [smem:[#allocation2 + $0x7]]
    %v455 = vstv %s454
    %v456 = vmul.f32 %v455, %v420
    %v457 = vmul.f32 %v455, %v421
    %v458 = vmul.f32 %v455, %v422
    %v459 = vmul.f32 %v455, %v423
    %464 = vrot.lane.b32.xlu0 %v456, 127
    %v465 = vpop.permute.xlu0 %464
    %466 = vrot.lane.b32.xlu0 %v457, 127
    %v467 = vpop.permute.xlu0 %466
    %468 = vrot.lane.b32.xlu0 %v458, 127
    %v469 = vpop.permute.xlu0 %468
    %470 = vrot.lane.b32.xlu0 %v459, 127
    %v471 = vpop.permute.xlu0 %470
    %v476 = vadd.f32 %v430, %v465
    %v477 = vadd.f32 %v431, %v467
    %v478 = vadd.f32 %v432, %v469
    %v479 = vadd.f32 %v433, %v471
    %s480 = sld [smem:[#allocation2 + $0x22]]
    %v481 = vstv %s480
    %v482 = vmul.f32 %v481, %v420
    %v483 = vmul.f32 %v481, %v421
    %v484 = vmul.f32 %v481, %v422
    %v485 = vmul.f32 %v481, %v423
    %490 = vrot.lane.b32.xlu0 %v482, 127
    %v491 = vpop.permute.xlu0 %490
    %492 = vrot.lane.b32.xlu0 %v483, 127
    %v493 = vpop.permute.xlu0 %492
    %494 = vrot.lane.b32.xlu0 %v484, 127
    %v495 = vpop.permute.xlu0 %494
    %496 = vrot.lane.b32.xlu0 %v485, 127
    %v497 = vpop.permute.xlu0 %496
    %v502 = vadd.f32 %v440, %v491
    %v503 = vadd.f32 %v441, %v493
    %v504 = vadd.f32 %v442, %v495
    %v505 = vadd.f32 %v443, %v497
    %s506 = sld [smem:[#allocation2 + $0x3d]]
    %v507 = vstv %s506
    %v508 = vmul.f32 %v507, %v420
    %v509 = vmul.f32 %v507, %v421
    %v510 = vmul.f32 %v507, %v422
    %v511 = vmul.f32 %v507, %v423
    %516 = vrot.lane.b32.xlu0 %v508, 127
    %v517 = vpop.permute.xlu0 %516
    %518 = vrot.lane.b32.xlu0 %v509, 127
    %v519 = vpop.permute.xlu0 %518
    %520 = vrot.lane.b32.xlu0 %v510, 127
    %v521 = vpop.permute.xlu0 %520
    %522 = vrot.lane.b32.xlu0 %v511, 127
    %v523 = vpop.permute.xlu0 %522
    %v528 = vadd.f32 %v450, %v517
    %v529 = vadd.f32 %v451, %v519
    %v530 = vadd.f32 %v452, %v521
    %v531 = vadd.f32 %v453, %v523
    %s532 = sld [smem:[#allocation2 + $0x8]]
    %v533 = vstv %s532
    %v534 = vmul.f32 %v533, %v420
    %v535 = vmul.f32 %v533, %v421
    %v536 = vmul.f32 %v533, %v422
    %v537 = vmul.f32 %v533, %v423
    %542 = vrot.lane.b32.xlu0 %v534, 126
    %v543 = vpop.permute.xlu0 %542
    %544 = vrot.lane.b32.xlu0 %v535, 126
    %v545 = vpop.permute.xlu0 %544
    %546 = vrot.lane.b32.xlu0 %v536, 126
    %v547 = vpop.permute.xlu0 %546
    %548 = vrot.lane.b32.xlu0 %v537, 126
    %v549 = vpop.permute.xlu0 %548
    %v554 = vadd.f32 %v476, %v543
    %v555 = vadd.f32 %v477, %v545
    %v556 = vadd.f32 %v478, %v547
    %v557 = vadd.f32 %v479, %v549
    %s558 = sld [smem:[#allocation2 + $0x23]]
    %v559 = vstv %s558
    %v560 = vmul.f32 %v559, %v420
    %v561 = vmul.f32 %v559, %v421
    %v562 = vmul.f32 %v559, %v422
    %v563 = vmul.f32 %v559, %v423
    %568 = vrot.lane.b32.xlu0 %v560, 126
    %v569 = vpop.permute.xlu0 %568
    %570 = vrot.lane.b32.xlu0 %v561, 126
    %v571 = vpop.permute.xlu0 %570
    %572 = vrot.lane.b32.xlu0 %v562, 126
    %v573 = vpop.permute.xlu0 %572
    %574 = vrot.lane.b32.xlu0 %v563, 126
    %v575 = vpop.permute.xlu0 %574
    %v580 = vadd.f32 %v502, %v569
    %v581 = vadd.f32 %v503, %v571
    %v582 = vadd.f32 %v504, %v573
    %v583 = vadd.f32 %v505, %v575
    %s584 = sld [smem:[#allocation2 + $0x3e]]
    %v585 = vstv %s584
    %v586 = vmul.f32 %v585, %v420
    %v587 = vmul.f32 %v585, %v421
    %v588 = vmul.f32 %v585, %v422
    %v589 = vmul.f32 %v585, %v423
    %594 = vrot.lane.b32.xlu0 %v586, 126
    %v595 = vpop.permute.xlu0 %594
    %596 = vrot.lane.b32.xlu0 %v587, 126
    %v597 = vpop.permute.xlu0 %596
    %598 = vrot.lane.b32.xlu0 %v588, 126
    %v599 = vpop.permute.xlu0 %598
    %600 = vrot.lane.b32.xlu0 %v589, 126
    %v601 = vpop.permute.xlu0 %600
    %v606 = vadd.f32 %v528, %v595
    %v607 = vadd.f32 %v529, %v597
    %v608 = vadd.f32 %v530, %v599
    %v609 = vadd.f32 %v531, %v601
    %s610 = scalar_lea.vmem [#allocation5], 16
    %v611 = vld [vmem:[%s610] sm:$0xff]
    %v612 = vld [vmem:[%s610 + $0x8] sm:$0x3f]
    %v613 = vld [vmem:[%s610 + $0x30] sm:$0xff]
    %v614 = vld [vmem:[%s610 + $0x38] sm:$0x3f]
    %s615 = sld [smem:[#allocation2 + $0x9]]
    %v616 = vstv %s615
    %v617 = vmul.f32 %v616, %v611
    %v618 = vmul.f32 %v616, %v612
    %v619 = vmul.f32 %v616, %v613
    %v620 = vmul.f32 %v616, %v614
    %v621 = vadd.f32 %v554, %v617
    %v622 = vadd.f32 %v555, %v618
    %v623 = vadd.f32 %v556, %v619
    %v624 = vadd.f32 %v557, %v620
    %s625 = sld [smem:[#allocation2 + $0x24]]
    %v626 = vstv %s625
    %v627 = vmul.f32 %v626, %v611
    %v628 = vmul.f32 %v626, %v612
    %v629 = vmul.f32 %v626, %v613
    %v630 = vmul.f32 %v626, %v614
    %v631 = vadd.f32 %v580, %v627
    %v632 = vadd.f32 %v581, %v628
    %v633 = vadd.f32 %v582, %v629
    %v634 = vadd.f32 %v583, %v630
    %s635 = sld [smem:[#allocation2 + $0x3f]]
    %v636 = vstv %s635
    %v637 = vmul.f32 %v636, %v611
    %v638 = vmul.f32 %v636, %v612
    %v639 = vmul.f32 %v636, %v613
    %v640 = vmul.f32 %v636, %v614
    %v641 = vadd.f32 %v606, %v637
    %v642 = vadd.f32 %v607, %v638
    %v643 = vadd.f32 %v608, %v639
    %v644 = vadd.f32 %v609, %v640
    %s645 = sld [smem:[#allocation2 + $0xa]]
    %v646 = vstv %s645
    %v647 = vmul.f32 %v646, %v611
    %v648 = vmul.f32 %v646, %v612
    %v649 = vmul.f32 %v646, %v613
    %v650 = vmul.f32 %v646, %v614
    %655 = vrot.lane.b32.xlu0 %v647, 127
    %v656 = vpop.permute.xlu0 %655
    %657 = vrot.lane.b32.xlu0 %v648, 127
    %v658 = vpop.permute.xlu0 %657
    %659 = vrot.lane.b32.xlu0 %v649, 127
    %v660 = vpop.permute.xlu0 %659
    %661 = vrot.lane.b32.xlu0 %v650, 127
    %v662 = vpop.permute.xlu0 %661
    %v667 = vadd.f32 %v621, %v656
    %v668 = vadd.f32 %v622, %v658
    %v669 = vadd.f32 %v623, %v660
    %v670 = vadd.f32 %v624, %v662
    %s671 = sld [smem:[#allocation2 + $0x25]]
    %v672 = vstv %s671
    %v673 = vmul.f32 %v672, %v611
    %v674 = vmul.f32 %v672, %v612
    %v675 = vmul.f32 %v672, %v613
    %v676 = vmul.f32 %v672, %v614
    %681 = vrot.lane.b32.xlu0 %v673, 127
    %v682 = vpop.permute.xlu0 %681
    %683 = vrot.lane.b32.xlu0 %v674, 127
    %v684 = vpop.permute.xlu0 %683
    %685 = vrot.lane.b32.xlu0 %v675, 127
    %v686 = vpop.permute.xlu0 %685
    %687 = vrot.lane.b32.xlu0 %v676, 127
    %v688 = vpop.permute.xlu0 %687
    %v693 = vadd.f32 %v631, %v682
    %v694 = vadd.f32 %v632, %v684
    %v695 = vadd.f32 %v633, %v686
    %v696 = vadd.f32 %v634, %v688
    %s697 = sld [smem:[#allocation2 + $0x40]]
    %v698 = vstv %s697
    %v699 = vmul.f32 %v698, %v611
    %v700 = vmul.f32 %v698, %v612
    %v701 = vmul.f32 %v698, %v613
    %v702 = vmul.f32 %v698, %v614
    %707 = vrot.lane.b32.xlu0 %v699, 127
    %v708 = vpop.permute.xlu0 %707
    %709 = vrot.lane.b32.xlu0 %v700, 127
    %v710 = vpop.permute.xlu0 %709
    %711 = vrot.lane.b32.xlu0 %v701, 127
    %v712 = vpop.permute.xlu0 %711
    %713 = vrot.lane.b32.xlu0 %v702, 127
    %v714 = vpop.permute.xlu0 %713
    %v719 = vadd.f32 %v641, %v708
    %v720 = vadd.f32 %v642, %v710
    %v721 = vadd.f32 %v643, %v712
    %v722 = vadd.f32 %v644, %v714
    %s723 = sld [smem:[#allocation2 + $0xb]]
    %v724 = vstv %s723
    %v725 = vmul.f32 %v724, %v611
    %v726 = vmul.f32 %v724, %v612
    %v727 = vmul.f32 %v724, %v613
    %v728 = vmul.f32 %v724, %v614
    %733 = vrot.lane.b32.xlu0 %v725, 126
    %v734 = vpop.permute.xlu0 %733
    %735 = vrot.lane.b32.xlu0 %v726, 126
    %v736 = vpop.permute.xlu0 %735
    %737 = vrot.lane.b32.xlu0 %v727, 126
    %v738 = vpop.permute.xlu0 %737
    %739 = vrot.lane.b32.xlu0 %v728, 126
    %v740 = vpop.permute.xlu0 %739
    %v745 = vadd.f32 %v667, %v734
    %v746 = vadd.f32 %v668, %v736
    %v747 = vadd.f32 %v669, %v738
    %v748 = vadd.f32 %v670, %v740
    %s749 = sld [smem:[#allocation2 + $0x26]]
    %v750 = vstv %s749
    %v751 = vmul.f32 %v750, %v611
    %v752 = vmul.f32 %v750, %v612
    %v753 = vmul.f32 %v750, %v613
    %v754 = vmul.f32 %v750, %v614
    %759 = vrot.lane.b32.xlu0 %v751, 126
    %v760 = vpop.permute.xlu0 %759
    %761 = vrot.lane.b32.xlu0 %v752, 126
    %v762 = vpop.permute.xlu0 %761
    %763 = vrot.lane.b32.xlu0 %v753, 126
    %v764 = vpop.permute.xlu0 %763
    %765 = vrot.lane.b32.xlu0 %v754, 126
    %v766 = vpop.permute.xlu0 %765
    %v771 = vadd.f32 %v693, %v760
    %v772 = vadd.f32 %v694, %v762
    %v773 = vadd.f32 %v695, %v764
    %v774 = vadd.f32 %v696, %v766
    %s775 = sld [smem:[#allocation2 + $0x41]]
    %v776 = vstv %s775
    %v777 = vmul.f32 %v776, %v611
    %v778 = vmul.f32 %v776, %v612
    %v779 = vmul.f32 %v776, %v613
    %v780 = vmul.f32 %v776, %v614
    %785 = vrot.lane.b32.xlu0 %v777, 126
    %v786 = vpop.permute.xlu0 %785
    %787 = vrot.lane.b32.xlu0 %v778, 126
    %v788 = vpop.permute.xlu0 %787
    %789 = vrot.lane.b32.xlu0 %v779, 126
    %v790 = vpop.permute.xlu0 %789
    %791 = vrot.lane.b32.xlu0 %v780, 126
    %v792 = vpop.permute.xlu0 %791
    %v797 = vadd.f32 %v719, %v786
    %v798 = vadd.f32 %v720, %v788
    %v799 = vadd.f32 %v721, %v790
    %v800 = vadd.f32 %v722, %v792
    %v801 = vld [vmem:[%s610 + $0x1] sm:$0xff]
    %v802 = vld [vmem:[%s610 + $0x9] sm:$0x3f]
    %v803 = vld [vmem:[%s610 + $0x31] sm:$0xff]
    %v804 = vld [vmem:[%s610 + $0x39] sm:$0x3f]
    %s805 = sld [smem:[#allocation2 + $0xc]]
    %v806 = vstv %s805
    %v807 = vmul.f32 %v806, %v801
    %v808 = vmul.f32 %v806, %v802
    %v809 = vmul.f32 %v806, %v803
    %v810 = vmul.f32 %v806, %v804
    %v811 = vadd.f32 %v745, %v807
    %v812 = vadd.f32 %v746, %v808
    %v813 = vadd.f32 %v747, %v809
    %v814 = vadd.f32 %v748, %v810
    %s815 = sld [smem:[#allocation2 + $0x27]]
    %v816 = vstv %s815
    %v817 = vmul.f32 %v816, %v801
    %v818 = vmul.f32 %v816, %v802
    %v819 = vmul.f32 %v816, %v803
    %v820 = vmul.f32 %v816, %v804
    %v821 = vadd.f32 %v771, %v817
    %v822 = vadd.f32 %v772, %v818
    %v823 = vadd.f32 %v773, %v819
    %v824 = vadd.f32 %v774, %v820
    %s825 = sld [smem:[#allocation2 + $0x42]]
    %v826 = vstv %s825
    %v827 = vmul.f32 %v826, %v801
    %v828 = vmul.f32 %v826, %v802
    %v829 = vmul.f32 %v826, %v803
    %v830 = vmul.f32 %v826, %v804
    %v831 = vadd.f32 %v797, %v827
    %v832 = vadd.f32 %v798, %v828
    %v833 = vadd.f32 %v799, %v829
    %v834 = vadd.f32 %v800, %v830
    %s835 = sld [smem:[#allocation2 + $0xd]]
    %v836 = vstv %s835
    %v837 = vmul.f32 %v836, %v801
    %v838 = vmul.f32 %v836, %v802
    %v839 = vmul.f32 %v836, %v803
    %v840 = vmul.f32 %v836, %v804
    %845 = vrot.lane.b32.xlu0 %v837, 127
    %v846 = vpop.permute.xlu0 %845
    %847 = vrot.lane.b32.xlu0 %v838, 127
    %v848 = vpop.permute.xlu0 %847
    %849 = vrot.lane.b32.xlu0 %v839, 127
    %v850 = vpop.permute.xlu0 %849
    %851 = vrot.lane.b32.xlu0 %v840, 127
    %v852 = vpop.permute.xlu0 %851
    %v857 = vadd.f32 %v811, %v846
    %v858 = vadd.f32 %v812, %v848
    %v859 = vadd.f32 %v813, %v850
    %v860 = vadd.f32 %v814, %v852
    %s861 = sld [smem:[#allocation2 + $0x28]]
    %v862 = vstv %s861
    %v863 = vmul.f32 %v862, %v801
    %v864 = vmul.f32 %v862, %v802
    %v865 = vmul.f32 %v862, %v803
    %v866 = vmul.f32 %v862, %v804
    %871 = vrot.lane.b32.xlu0 %v863, 127
    %v872 = vpop.permute.xlu0 %871
    %873 = vrot.lane.b32.xlu0 %v864, 127
    %v874 = vpop.permute.xlu0 %873
    %875 = vrot.lane.b32.xlu0 %v865, 127
    %v876 = vpop.permute.xlu0 %875
    %877 = vrot.lane.b32.xlu0 %v866, 127
    %v878 = vpop.permute.xlu0 %877
    %v883 = vadd.f32 %v821, %v872
    %v884 = vadd.f32 %v822, %v874
    %v885 = vadd.f32 %v823, %v876
    %v886 = vadd.f32 %v824, %v878
    %s887 = sld [smem:[#allocation2 + $0x43]]
    %v888 = vstv %s887
    %v889 = vmul.f32 %v888, %v801
    %v890 = vmul.f32 %v888, %v802
    %v891 = vmul.f32 %v888, %v803
    %v892 = vmul.f32 %v888, %v804
    %897 = vrot.lane.b32.xlu0 %v889, 127
    %v898 = vpop.permute.xlu0 %897
    %899 = vrot.lane.b32.xlu0 %v890, 127
    %v900 = vpop.permute.xlu0 %899
    %901 = vrot.lane.b32.xlu0 %v891, 127
    %v902 = vpop.permute.xlu0 %901
    %903 = vrot.lane.b32.xlu0 %v892, 127
    %v904 = vpop.permute.xlu0 %903
    %v909 = vadd.f32 %v831, %v898
    %v910 = vadd.f32 %v832, %v900
    %v911 = vadd.f32 %v833, %v902
    %v912 = vadd.f32 %v834, %v904
    %s913 = sld [smem:[#allocation2 + $0xe]]
    %v914 = vstv %s913
    %v915 = vmul.f32 %v914, %v801
    %v916 = vmul.f32 %v914, %v802
    %v917 = vmul.f32 %v914, %v803
    %v918 = vmul.f32 %v914, %v804
    %923 = vrot.lane.b32.xlu0 %v915, 126
    %v924 = vpop.permute.xlu0 %923
    %925 = vrot.lane.b32.xlu0 %v916, 126
    %v926 = vpop.permute.xlu0 %925
    %927 = vrot.lane.b32.xlu0 %v917, 126
    %v928 = vpop.permute.xlu0 %927
    %929 = vrot.lane.b32.xlu0 %v918, 126
    %v930 = vpop.permute.xlu0 %929
    %v935 = vadd.f32 %v857, %v924
    %v936 = vadd.f32 %v858, %v926
    %v937 = vadd.f32 %v859, %v928
    %v938 = vadd.f32 %v860, %v930
    %s939 = sld [smem:[#allocation2 + $0x29]]
    %v940 = vstv %s939
    %v941 = vmul.f32 %v940, %v801
    %v942 = vmul.f32 %v940, %v802
    %v943 = vmul.f32 %v940, %v803
    %v944 = vmul.f32 %v940, %v804
    %949 = vrot.lane.b32.xlu0 %v941, 126
    %v950 = vpop.permute.xlu0 %949
    %951 = vrot.lane.b32.xlu0 %v942, 126
    %v952 = vpop.permute.xlu0 %951
    %953 = vrot.lane.b32.xlu0 %v943, 126
    %v954 = vpop.permute.xlu0 %953
    %955 = vrot.lane.b32.xlu0 %v944, 126
    %v956 = vpop.permute.xlu0 %955
    %v961 = vadd.f32 %v883, %v950
    %v962 = vadd.f32 %v884, %v952
    %v963 = vadd.f32 %v885, %v954
    %v964 = vadd.f32 %v886, %v956
    %s965 = sld [smem:[#allocation2 + $0x44]]
    %v966 = vstv %s965
    %v967 = vmul.f32 %v966, %v801
    %v968 = vmul.f32 %v966, %v802
    %v969 = vmul.f32 %v966, %v803
    %v970 = vmul.f32 %v966, %v804
    %975 = vrot.lane.b32.xlu0 %v967, 126
    %v976 = vpop.permute.xlu0 %975
    %977 = vrot.lane.b32.xlu0 %v968, 126
    %v978 = vpop.permute.xlu0 %977
    %979 = vrot.lane.b32.xlu0 %v969, 126
    %v980 = vpop.permute.xlu0 %979
    %981 = vrot.lane.b32.xlu0 %v970, 126
    %v982 = vpop.permute.xlu0 %981
    %v987 = vadd.f32 %v909, %v976
    %v988 = vadd.f32 %v910, %v978
    %v989 = vadd.f32 %v911, %v980
    %v990 = vadd.f32 %v912, %v982
    %v991 = vld [vmem:[%s610 + $0x2] sm:$0xff]
    %v992 = vld [vmem:[%s610 + $0xa] sm:$0x3f]
    %v993 = vld [vmem:[%s610 + $0x32] sm:$0xff]
    %v994 = vld [vmem:[%s610 + $0x3a] sm:$0x3f]
    %s995 = sld [smem:[#allocation2 + $0xf]]
    %v996 = vstv %s995
    %v997 = vmul.f32 %v996, %v991
    %v998 = vmul.f32 %v996, %v992
    %v999 = vmul.f32 %v996, %v993
    %v1000 = vmul.f32 %v996, %v994
    %v1001 = vadd.f32 %v935, %v997
    %v1002 = vadd.f32 %v936, %v998
    %v1003 = vadd.f32 %v937, %v999
    %v1004 = vadd.f32 %v938, %v1000
    %s1005 = sld [smem:[#allocation2 + $0x2a]]
    %v1006 = vstv %s1005
    %v1007 = vmul.f32 %v1006, %v991
    %v1008 = vmul.f32 %v1006, %v992
    %v1009 = vmul.f32 %v1006, %v993
    %v1010 = vmul.f32 %v1006, %v994
    %v1011 = vadd.f32 %v961, %v1007
    %v1012 = vadd.f32 %v962, %v1008
    %v1013 = vadd.f32 %v963, %v1009
    %v1014 = vadd.f32 %v964, %v1010
    %s1015 = sld [smem:[#allocation2 + $0x45]]
    %v1016 = vstv %s1015
    %v1017 = vmul.f32 %v1016, %v991
    %v1018 = vmul.f32 %v1016, %v992
    %v1019 = vmul.f32 %v1016, %v993
    %v1020 = vmul.f32 %v1016, %v994
    %v1021 = vadd.f32 %v987, %v1017
    %v1022 = vadd.f32 %v988, %v1018
    %v1023 = vadd.f32 %v989, %v1019
    %v1024 = vadd.f32 %v990, %v1020
    %s1025 = sld [smem:[#allocation2 + $0x10]]
    %v1026 = vstv %s1025
    %v1027 = vmul.f32 %v1026, %v991
    %v1028 = vmul.f32 %v1026, %v992
    %v1029 = vmul.f32 %v1026, %v993
    %v1030 = vmul.f32 %v1026, %v994
    %1035 = vrot.lane.b32.xlu0 %v1027, 127
    %v1036 = vpop.permute.xlu0 %1035
    %1037 = vrot.lane.b32.xlu0 %v1028, 127
    %v1038 = vpop.permute.xlu0 %1037
    %1039 = vrot.lane.b32.xlu0 %v1029, 127
    %v1040 = vpop.permute.xlu0 %1039
    %1041 = vrot.lane.b32.xlu0 %v1030, 127
    %v1042 = vpop.permute.xlu0 %1041
    %v1047 = vadd.f32 %v1001, %v1036
    %v1048 = vadd.f32 %v1002, %v1038
    %v1049 = vadd.f32 %v1003, %v1040
    %v1050 = vadd.f32 %v1004, %v1042
    %s1051 = sld [smem:[#allocation2 + $0x2b]]
    %v1052 = vstv %s1051
    %v1053 = vmul.f32 %v1052, %v991
    %v1054 = vmul.f32 %v1052, %v992
    %v1055 = vmul.f32 %v1052, %v993
    %v1056 = vmul.f32 %v1052, %v994
    %1061 = vrot.lane.b32.xlu0 %v1053, 127
    %v1062 = vpop.permute.xlu0 %1061
    %1063 = vrot.lane.b32.xlu0 %v1054, 127
    %v1064 = vpop.permute.xlu0 %1063
    %1065 = vrot.lane.b32.xlu0 %v1055, 127
    %v1066 = vpop.permute.xlu0 %1065
    %1067 = vrot.lane.b32.xlu0 %v1056, 127
    %v1068 = vpop.permute.xlu0 %1067
    %v1073 = vadd.f32 %v1011, %v1062
    %v1074 = vadd.f32 %v1012, %v1064
    %v1075 = vadd.f32 %v1013, %v1066
    %v1076 = vadd.f32 %v1014, %v1068
    %s1077 = sld [smem:[#allocation2 + $0x46]]
    %v1078 = vstv %s1077
    %v1079 = vmul.f32 %v1078, %v991
    %v1080 = vmul.f32 %v1078, %v992
    %v1081 = vmul.f32 %v1078, %v993
    %v1082 = vmul.f32 %v1078, %v994
    %1087 = vrot.lane.b32.xlu0 %v1079, 127
    %v1088 = vpop.permute.xlu0 %1087
    %1089 = vrot.lane.b32.xlu0 %v1080, 127
    %v1090 = vpop.permute.xlu0 %1089
    %1091 = vrot.lane.b32.xlu0 %v1081, 127
    %v1092 = vpop.permute.xlu0 %1091
    %1093 = vrot.lane.b32.xlu0 %v1082, 127
    %v1094 = vpop.permute.xlu0 %1093
    %v1099 = vadd.f32 %v1021, %v1088
    %v1100 = vadd.f32 %v1022, %v1090
    %v1101 = vadd.f32 %v1023, %v1092
    %v1102 = vadd.f32 %v1024, %v1094
    %s1103 = sld [smem:[#allocation2 + $0x11]]
    %v1104 = vstv %s1103
    %v1105 = vmul.f32 %v1104, %v991
    %v1106 = vmul.f32 %v1104, %v992
    %v1107 = vmul.f32 %v1104, %v993
    %v1108 = vmul.f32 %v1104, %v994
    %1113 = vrot.lane.b32.xlu0 %v1105, 126
    %v1114 = vpop.permute.xlu0 %1113
    %1115 = vrot.lane.b32.xlu0 %v1106, 126
    %v1116 = vpop.permute.xlu0 %1115
    %1117 = vrot.lane.b32.xlu0 %v1107, 126
    %v1118 = vpop.permute.xlu0 %1117
    %1119 = vrot.lane.b32.xlu0 %v1108, 126
    %v1120 = vpop.permute.xlu0 %1119
    %v1125 = vadd.f32 %v1047, %v1114
    %v1126 = vadd.f32 %v1048, %v1116
    %v1127 = vadd.f32 %v1049, %v1118
    %v1128 = vadd.f32 %v1050, %v1120
    %s1129 = sld [smem:[#allocation2 + $0x2c]]
    %v1130 = vstv %s1129
    %v1131 = vmul.f32 %v1130, %v991
    %v1132 = vmul.f32 %v1130, %v992
    %v1133 = vmul.f32 %v1130, %v993
    %v1134 = vmul.f32 %v1130, %v994
    %1139 = vrot.lane.b32.xlu0 %v1131, 126
    %v1140 = vpop.permute.xlu0 %1139
    %1141 = vrot.lane.b32.xlu0 %v1132, 126
    %v1142 = vpop.permute.xlu0 %1141
    %1143 = vrot.lane.b32.xlu0 %v1133, 126
    %v1144 = vpop.permute.xlu0 %1143
    %1145 = vrot.lane.b32.xlu0 %v1134, 126
    %v1146 = vpop.permute.xlu0 %1145
    %v1151 = vadd.f32 %v1073, %v1140
    %v1152 = vadd.f32 %v1074, %v1142
    %v1153 = vadd.f32 %v1075, %v1144
    %v1154 = vadd.f32 %v1076, %v1146
    %s1155 = sld [smem:[#allocation2 + $0x47]]
    %v1156 = vstv %s1155
    %v1157 = vmul.f32 %v1156, %v991
    %v1158 = vmul.f32 %v1156, %v992
    %v1159 = vmul.f32 %v1156, %v993
    %v1160 = vmul.f32 %v1156, %v994
    %1165 = vrot.lane.b32.xlu0 %v1157, 126
    %v1166 = vpop.permute.xlu0 %1165
    %1167 = vrot.lane.b32.xlu0 %v1158, 126
    %v1168 = vpop.permute.xlu0 %1167
    %1169 = vrot.lane.b32.xlu0 %v1159, 126
    %v1170 = vpop.permute.xlu0 %1169
    %1171 = vrot.lane.b32.xlu0 %v1160, 126
    %v1172 = vpop.permute.xlu0 %1171
    %v1177 = vadd.f32 %v1099, %v1166
    %v1178 = vadd.f32 %v1100, %v1168
    %v1179 = vadd.f32 %v1101, %v1170
    %v1180 = vadd.f32 %v1102, %v1172
    %s1181 = scalar_lea.vmem [#allocation5], 32
    %v1182 = vld [vmem:[%s1181] sm:$0xff]
    %v1183 = vld [vmem:[%s1181 + $0x8] sm:$0x3f]
    %v1184 = vld [vmem:[%s1181 + $0x30] sm:$0xff]
    %v1185 = vld [vmem:[%s1181 + $0x38] sm:$0x3f]
    %s1186 = sld [smem:[#allocation2 + $0x12]]
    %v1187 = vstv %s1186
    %v1188 = vmul.f32 %v1187, %v1182
    %v1189 = vmul.f32 %v1187, %v1183
    %v1190 = vmul.f32 %v1187, %v1184
    %v1191 = vmul.f32 %v1187, %v1185
    %v1192 = vadd.f32 %v1125, %v1188
    %v1193 = vadd.f32 %v1126, %v1189
    %v1194 = vadd.f32 %v1127, %v1190
    %v1195 = vadd.f32 %v1128, %v1191
    %s1196 = sld [smem:[#allocation2 + $0x2d]]
    %v1197 = vstv %s1196
    %v1198 = vmul.f32 %v1197, %v1182
    %v1199 = vmul.f32 %v1197, %v1183
    %v1200 = vmul.f32 %v1197, %v1184
    %v1201 = vmul.f32 %v1197, %v1185
    %v1202 = vadd.f32 %v1151, %v1198
    %v1203 = vadd.f32 %v1152, %v1199
    %v1204 = vadd.f32 %v1153, %v1200
    %v1205 = vadd.f32 %v1154, %v1201
    %s1206 = sld [smem:[#allocation2 + $0x48]]
    %v1207 = vstv %s1206
    %v1208 = vmul.f32 %v1207, %v1182
    %v1209 = vmul.f32 %v1207, %v1183
    %v1210 = vmul.f32 %v1207, %v1184
    %v1211 = vmul.f32 %v1207, %v1185
    %v1212 = vadd.f32 %v1177, %v1208
    %v1213 = vadd.f32 %v1178, %v1209
    %v1214 = vadd.f32 %v1179, %v1210
    %v1215 = vadd.f32 %v1180, %v1211
    %s1216 = sld [smem:[#allocation2 + $0x13]]
    %v1217 = vstv %s1216
    %v1218 = vmul.f32 %v1217, %v1182
    %v1219 = vmul.f32 %v1217, %v1183
    %v1220 = vmul.f32 %v1217, %v1184
    %v1221 = vmul.f32 %v1217, %v1185
    %1226 = vrot.lane.b32.xlu0 %v1218, 127
    %v1227 = vpop.permute.xlu0 %1226
    %1228 = vrot.lane.b32.xlu0 %v1219, 127
    %v1229 = vpop.permute.xlu0 %1228
    %1230 = vrot.lane.b32.xlu0 %v1220, 127
    %v1231 = vpop.permute.xlu0 %1230
    %1232 = vrot.lane.b32.xlu0 %v1221, 127
    %v1233 = vpop.permute.xlu0 %1232
    %v1238 = vadd.f32 %v1192, %v1227
    %v1239 = vadd.f32 %v1193, %v1229
    %v1240 = vadd.f32 %v1194, %v1231
    %v1241 = vadd.f32 %v1195, %v1233
    %s1242 = sld [smem:[#allocation2 + $0x2e]]
    %v1243 = vstv %s1242
    %v1244 = vmul.f32 %v1243, %v1182
    %v1245 = vmul.f32 %v1243, %v1183
    %v1246 = vmul.f32 %v1243, %v1184
    %v1247 = vmul.f32 %v1243, %v1185
    %1252 = vrot.lane.b32.xlu0 %v1244, 127
    %v1253 = vpop.permute.xlu0 %1252
    %1254 = vrot.lane.b32.xlu0 %v1245, 127
    %v1255 = vpop.permute.xlu0 %1254
    %1256 = vrot.lane.b32.xlu0 %v1246, 127
    %v1257 = vpop.permute.xlu0 %1256
    %1258 = vrot.lane.b32.xlu0 %v1247, 127
    %v1259 = vpop.permute.xlu0 %1258
    %v1264 = vadd.f32 %v1202, %v1253
    %v1265 = vadd.f32 %v1203, %v1255
    %v1266 = vadd.f32 %v1204, %v1257
    %v1267 = vadd.f32 %v1205, %v1259
    %s1268 = sld [smem:[#allocation2 + $0x49]]
    %v1269 = vstv %s1268
    %v1270 = vmul.f32 %v1269, %v1182
    %v1271 = vmul.f32 %v1269, %v1183
    %v1272 = vmul.f32 %v1269, %v1184
    %v1273 = vmul.f32 %v1269, %v1185
    %1278 = vrot.lane.b32.xlu0 %v1270, 127
    %v1279 = vpop.permute.xlu0 %1278
    %1280 = vrot.lane.b32.xlu0 %v1271, 127
    %v1281 = vpop.permute.xlu0 %1280
    %1282 = vrot.lane.b32.xlu0 %v1272, 127
    %v1283 = vpop.permute.xlu0 %1282
    %1284 = vrot.lane.b32.xlu0 %v1273, 127
    %v1285 = vpop.permute.xlu0 %1284
    %v1290 = vadd.f32 %v1212, %v1279
    %v1291 = vadd.f32 %v1213, %v1281
    %v1292 = vadd.f32 %v1214, %v1283
    %v1293 = vadd.f32 %v1215, %v1285
    %s1294 = sld [smem:[#allocation2 + $0x14]]
    %v1295 = vstv %s1294
    %v1296 = vmul.f32 %v1295, %v1182
    %v1297 = vmul.f32 %v1295, %v1183
    %v1298 = vmul.f32 %v1295, %v1184
    %v1299 = vmul.f32 %v1295, %v1185
    %1304 = vrot.lane.b32.xlu0 %v1296, 126
    %v1305 = vpop.permute.xlu0 %1304
    %1306 = vrot.lane.b32.xlu0 %v1297, 126
    %v1307 = vpop.permute.xlu0 %1306
    %1308 = vrot.lane.b32.xlu0 %v1298, 126
    %v1309 = vpop.permute.xlu0 %1308
    %1310 = vrot.lane.b32.xlu0 %v1299, 126
    %v1311 = vpop.permute.xlu0 %1310
    %v1316 = vadd.f32 %v1238, %v1305
    %v1317 = vadd.f32 %v1239, %v1307
    %v1318 = vadd.f32 %v1240, %v1309
    %v1319 = vadd.f32 %v1241, %v1311
    %s1320 = sld [smem:[#allocation2 + $0x2f]]
    %v1321 = vstv %s1320
    %v1322 = vmul.f32 %v1321, %v1182
    %v1323 = vmul.f32 %v1321, %v1183
    %v1324 = vmul.f32 %v1321, %v1184
    %v1325 = vmul.f32 %v1321, %v1185
    %1330 = vrot.lane.b32.xlu0 %v1322, 126
    %v1331 = vpop.permute.xlu0 %1330
    %1332 = vrot.lane.b32.xlu0 %v1323, 126
    %v1333 = vpop.permute.xlu0 %1332
    %1334 = vrot.lane.b32.xlu0 %v1324, 126
    %v1335 = vpop.permute.xlu0 %1334
    %1336 = vrot.lane.b32.xlu0 %v1325, 126
    %v1337 = vpop.permute.xlu0 %1336
    %v1342 = vadd.f32 %v1264, %v1331
    %v1343 = vadd.f32 %v1265, %v1333
    %v1344 = vadd.f32 %v1266, %v1335
    %v1345 = vadd.f32 %v1267, %v1337
    %s1346 = sld [smem:[#allocation2 + $0x4a]]
    %v1347 = vstv %s1346
    %v1348 = vmul.f32 %v1347, %v1182
    %v1349 = vmul.f32 %v1347, %v1183
    %v1350 = vmul.f32 %v1347, %v1184
    %v1351 = vmul.f32 %v1347, %v1185
    %1356 = vrot.lane.b32.xlu0 %v1348, 126
    %v1357 = vpop.permute.xlu0 %1356
    %1358 = vrot.lane.b32.xlu0 %v1349, 126
    %v1359 = vpop.permute.xlu0 %1358
    %1360 = vrot.lane.b32.xlu0 %v1350, 126
    %v1361 = vpop.permute.xlu0 %1360
    %1362 = vrot.lane.b32.xlu0 %v1351, 126
    %v1363 = vpop.permute.xlu0 %1362
    %v1368 = vadd.f32 %v1290, %v1357
    %v1369 = vadd.f32 %v1291, %v1359
    %v1370 = vadd.f32 %v1292, %v1361
    %v1371 = vadd.f32 %v1293, %v1363
    %v1372 = vld [vmem:[%s1181 + $0x1] sm:$0xff]
    %v1373 = vld [vmem:[%s1181 + $0x9] sm:$0x3f]
    %v1374 = vld [vmem:[%s1181 + $0x31] sm:$0xff]
    %v1375 = vld [vmem:[%s1181 + $0x39] sm:$0x3f]
    %s1376 = sld [smem:[#allocation2 + $0x15]]
    %v1377 = vstv %s1376
    %v1378 = vmul.f32 %v1377, %v1372
    %v1379 = vmul.f32 %v1377, %v1373
    %v1380 = vmul.f32 %v1377, %v1374
    %v1381 = vmul.f32 %v1377, %v1375
    %v1382 = vadd.f32 %v1316, %v1378
    %v1383 = vadd.f32 %v1317, %v1379
    %v1384 = vadd.f32 %v1318, %v1380
    %v1385 = vadd.f32 %v1319, %v1381
    %s1386 = sld [smem:[#allocation2 + $0x30]]
    %v1387 = vstv %s1386
    %v1388 = vmul.f32 %v1387, %v1372
    %v1389 = vmul.f32 %v1387, %v1373
    %v1390 = vmul.f32 %v1387, %v1374
    %v1391 = vmul.f32 %v1387, %v1375
    %v1392 = vadd.f32 %v1342, %v1388
    %v1393 = vadd.f32 %v1343, %v1389
    %v1394 = vadd.f32 %v1344, %v1390
    %v1395 = vadd.f32 %v1345, %v1391
    %s1396 = sld [smem:[#allocation2 + $0x4b]]
    %v1397 = vstv %s1396
    %v1398 = vmul.f32 %v1397, %v1372
    %v1399 = vmul.f32 %v1397, %v1373
    %v1400 = vmul.f32 %v1397, %v1374
    %v1401 = vmul.f32 %v1397, %v1375
    %v1402 = vadd.f32 %v1368, %v1398
    %v1403 = vadd.f32 %v1369, %v1399
    %v1404 = vadd.f32 %v1370, %v1400
    %v1405 = vadd.f32 %v1371, %v1401
    %s1406 = sld [smem:[#allocation2 + $0x16]]
    %v1407 = vstv %s1406
    %v1408 = vmul.f32 %v1407, %v1372
    %v1409 = vmul.f32 %v1407, %v1373
    %v1410 = vmul.f32 %v1407, %v1374
    %v1411 = vmul.f32 %v1407, %v1375
    %1416 = vrot.lane.b32.xlu0 %v1408, 127
    %v1417 = vpop.permute.xlu0 %1416
    %1418 = vrot.lane.b32.xlu0 %v1409, 127
    %v1419 = vpop.permute.xlu0 %1418
    %1420 = vrot.lane.b32.xlu0 %v1410, 127
    %v1421 = vpop.permute.xlu0 %1420
    %1422 = vrot.lane.b32.xlu0 %v1411, 127
    %v1423 = vpop.permute.xlu0 %1422
    %v1428 = vadd.f32 %v1382, %v1417
    %v1429 = vadd.f32 %v1383, %v1419
    %v1430 = vadd.f32 %v1384, %v1421
    %v1431 = vadd.f32 %v1385, %v1423
    %s1432 = sld [smem:[#allocation2 + $0x31]]
    %v1433 = vstv %s1432
    %v1434 = vmul.f32 %v1433, %v1372
    %v1435 = vmul.f32 %v1433, %v1373
    %v1436 = vmul.f32 %v1433, %v1374
    %v1437 = vmul.f32 %v1433, %v1375
    %1442 = vrot.lane.b32.xlu0 %v1434, 127
    %v1443 = vpop.permute.xlu0 %1442
    %1444 = vrot.lane.b32.xlu0 %v1435, 127
    %v1445 = vpop.permute.xlu0 %1444
    %1446 = vrot.lane.b32.xlu0 %v1436, 127
    %v1447 = vpop.permute.xlu0 %1446
    %1448 = vrot.lane.b32.xlu0 %v1437, 127
    %v1449 = vpop.permute.xlu0 %1448
    %v1454 = vadd.f32 %v1392, %v1443
    %v1455 = vadd.f32 %v1393, %v1445
    %v1456 = vadd.f32 %v1394, %v1447
    %v1457 = vadd.f32 %v1395, %v1449
    %s1458 = sld [smem:[#allocation2 + $0x4c]]
    %v1459 = vstv %s1458
    %v1460 = vmul.f32 %v1459, %v1372
    %v1461 = vmul.f32 %v1459, %v1373
    %v1462 = vmul.f32 %v1459, %v1374
    %v1463 = vmul.f32 %v1459, %v1375
    %1468 = vrot.lane.b32.xlu0 %v1460, 127
    %v1469 = vpop.permute.xlu0 %1468
    %1470 = vrot.lane.b32.xlu0 %v1461, 127
    %v1471 = vpop.permute.xlu0 %1470
    %1472 = vrot.lane.b32.xlu0 %v1462, 127
    %v1473 = vpop.permute.xlu0 %1472
    %1474 = vrot.lane.b32.xlu0 %v1463, 127
    %v1475 = vpop.permute.xlu0 %1474
    %v1480 = vadd.f32 %v1402, %v1469
    %v1481 = vadd.f32 %v1403, %v1471
    %v1482 = vadd.f32 %v1404, %v1473
    %v1483 = vadd.f32 %v1405, %v1475
    %s1484 = sld [smem:[#allocation2 + $0x17]]
    %v1485 = vstv %s1484
    %v1486 = vmul.f32 %v1485, %v1372
    %v1487 = vmul.f32 %v1485, %v1373
    %v1488 = vmul.f32 %v1485, %v1374
    %v1489 = vmul.f32 %v1485, %v1375
    %1494 = vrot.lane.b32.xlu0 %v1486, 126
    %v1495 = vpop.permute.xlu0 %1494
    %1496 = vrot.lane.b32.xlu0 %v1487, 126
    %v1497 = vpop.permute.xlu0 %1496
    %1498 = vrot.lane.b32.xlu0 %v1488, 126
    %v1499 = vpop.permute.xlu0 %1498
    %1500 = vrot.lane.b32.xlu0 %v1489, 126
    %v1501 = vpop.permute.xlu0 %1500
    %v1506 = vadd.f32 %v1428, %v1495
    %v1507 = vadd.f32 %v1429, %v1497
    %v1508 = vadd.f32 %v1430, %v1499
    %v1509 = vadd.f32 %v1431, %v1501
    %s1510 = sld [smem:[#allocation2 + $0x32]]
    %v1511 = vstv %s1510
    %v1512 = vmul.f32 %v1511, %v1372
    %v1513 = vmul.f32 %v1511, %v1373
    %v1514 = vmul.f32 %v1511, %v1374
    %v1515 = vmul.f32 %v1511, %v1375
    %1520 = vrot.lane.b32.xlu0 %v1512, 126
    %v1521 = vpop.permute.xlu0 %1520
    %1522 = vrot.lane.b32.xlu0 %v1513, 126
    %v1523 = vpop.permute.xlu0 %1522
    %1524 = vrot.lane.b32.xlu0 %v1514, 126
    %v1525 = vpop.permute.xlu0 %1524
    %1526 = vrot.lane.b32.xlu0 %v1515, 126
    %v1527 = vpop.permute.xlu0 %1526
    %v1532 = vadd.f32 %v1454, %v1521
    %v1533 = vadd.f32 %v1455, %v1523
    %v1534 = vadd.f32 %v1456, %v1525
    %v1535 = vadd.f32 %v1457, %v1527
    %s1536 = sld [smem:[#allocation2 + $0x4d]]
    %v1537 = vstv %s1536
    %v1538 = vmul.f32 %v1537, %v1372
    %v1539 = vmul.f32 %v1537, %v1373
    %v1540 = vmul.f32 %v1537, %v1374
    %v1541 = vmul.f32 %v1537, %v1375
    %1546 = vrot.lane.b32.xlu0 %v1538, 126
    %v1547 = vpop.permute.xlu0 %1546
    %1548 = vrot.lane.b32.xlu0 %v1539, 126
    %v1549 = vpop.permute.xlu0 %1548
    %1550 = vrot.lane.b32.xlu0 %v1540, 126
    %v1551 = vpop.permute.xlu0 %1550
    %1552 = vrot.lane.b32.xlu0 %v1541, 126
    %v1553 = vpop.permute.xlu0 %1552
    %v1558 = vadd.f32 %v1480, %v1547
    %v1559 = vadd.f32 %v1481, %v1549
    %v1560 = vadd.f32 %v1482, %v1551
    %v1561 = vadd.f32 %v1483, %v1553
    %v1562 = vld [vmem:[%s1181 + $0x2] sm:$0xff]
    %v1563 = vld [vmem:[%s1181 + $0xa] sm:$0x3f]
    %v1564 = vld [vmem:[%s1181 + $0x32] sm:$0xff]
    %v1565 = vld [vmem:[%s1181 + $0x3a] sm:$0x3f]
    %s1566 = sld [smem:[#allocation2 + $0x18]]
    %v1567 = vstv %s1566
    %v1568 = vmul.f32 %v1567, %v1562
    %v1569 = vmul.f32 %v1567, %v1563
    %v1570 = vmul.f32 %v1567, %v1564
    %v1571 = vmul.f32 %v1567, %v1565
    %v1572 = vadd.f32 %v1506, %v1568
    %v1573 = vadd.f32 %v1507, %v1569
    %v1574 = vadd.f32 %v1508, %v1570
    %v1575 = vadd.f32 %v1509, %v1571
    %s1576 = sld [smem:[#allocation2 + $0x33]]
    %v1577 = vstv %s1576
    %v1578 = vmul.f32 %v1577, %v1562
    %v1579 = vmul.f32 %v1577, %v1563
    %v1580 = vmul.f32 %v1577, %v1564
    %v1581 = vmul.f32 %v1577, %v1565
    %v1582 = vadd.f32 %v1532, %v1578
    %v1583 = vadd.f32 %v1533, %v1579
    %v1584 = vadd.f32 %v1534, %v1580
    %v1585 = vadd.f32 %v1535, %v1581
    %s1586 = sld [smem:[#allocation2 + $0x4e]]
    %v1587 = vstv %s1586
    %v1588 = vmul.f32 %v1587, %v1562
    %v1589 = vmul.f32 %v1587, %v1563
    %v1590 = vmul.f32 %v1587, %v1564
    %v1591 = vmul.f32 %v1587, %v1565
    %v1592 = vadd.f32 %v1558, %v1588
    %v1593 = vadd.f32 %v1559, %v1589
    %v1594 = vadd.f32 %v1560, %v1590
    %v1595 = vadd.f32 %v1561, %v1591
    %s1596 = sld [smem:[#allocation2 + $0x19]]
    %v1597 = vstv %s1596
    %v1598 = vmul.f32 %v1597, %v1562
    %v1599 = vmul.f32 %v1597, %v1563
    %v1600 = vmul.f32 %v1597, %v1564
    %v1601 = vmul.f32 %v1597, %v1565
    %1606 = vrot.lane.b32.xlu0 %v1598, 127
    %v1607 = vpop.permute.xlu0 %1606
    %1608 = vrot.lane.b32.xlu0 %v1599, 127
    %v1609 = vpop.permute.xlu0 %1608
    %1610 = vrot.lane.b32.xlu0 %v1600, 127
    %v1611 = vpop.permute.xlu0 %1610
    %1612 = vrot.lane.b32.xlu0 %v1601, 127
    %v1613 = vpop.permute.xlu0 %1612
    %v1618 = vadd.f32 %v1572, %v1607
    %v1619 = vadd.f32 %v1573, %v1609
    %v1620 = vadd.f32 %v1574, %v1611
    %v1621 = vadd.f32 %v1575, %v1613
    %s1622 = sld [smem:[#allocation2 + $0x34]]
    %v1623 = vstv %s1622
    %v1624 = vmul.f32 %v1623, %v1562
    %v1625 = vmul.f32 %v1623, %v1563
    %v1626 = vmul.f32 %v1623, %v1564
    %v1627 = vmul.f32 %v1623, %v1565
    %1632 = vrot.lane.b32.xlu0 %v1624, 127
    %v1633 = vpop.permute.xlu0 %1632
    %1634 = vrot.lane.b32.xlu0 %v1625, 127
    %v1635 = vpop.permute.xlu0 %1634
    %1636 = vrot.lane.b32.xlu0 %v1626, 127
    %v1637 = vpop.permute.xlu0 %1636
    %1638 = vrot.lane.b32.xlu0 %v1627, 127
    %v1639 = vpop.permute.xlu0 %1638
    %v1644 = vadd.f32 %v1582, %v1633
    %v1645 = vadd.f32 %v1583, %v1635
    %v1646 = vadd.f32 %v1584, %v1637
    %v1647 = vadd.f32 %v1585, %v1639
    %s1648 = sld [smem:[#allocation2 + $0x4f]]
    %v1649 = vstv %s1648
    %v1650 = vmul.f32 %v1649, %v1562
    %v1651 = vmul.f32 %v1649, %v1563
    %v1652 = vmul.f32 %v1649, %v1564
    %v1653 = vmul.f32 %v1649, %v1565
    %1658 = vrot.lane.b32.xlu0 %v1650, 127
    %v1659 = vpop.permute.xlu0 %1658
    %1660 = vrot.lane.b32.xlu0 %v1651, 127
    %v1661 = vpop.permute.xlu0 %1660
    %1662 = vrot.lane.b32.xlu0 %v1652, 127
    %v1663 = vpop.permute.xlu0 %1662
    %1664 = vrot.lane.b32.xlu0 %v1653, 127
    %v1665 = vpop.permute.xlu0 %1664
    %v1670 = vadd.f32 %v1592, %v1659
    %v1671 = vadd.f32 %v1593, %v1661
    %v1672 = vadd.f32 %v1594, %v1663
    %v1673 = vadd.f32 %v1595, %v1665
    %s1674 = sld [smem:[#allocation2 + $0x1a]]
    %v1675 = vstv %s1674
    %v1676 = vmul.f32 %v1675, %v1562
    %v1677 = vmul.f32 %v1675, %v1563
    %v1678 = vmul.f32 %v1675, %v1564
    %v1679 = vmul.f32 %v1675, %v1565
    %1684 = vrot.lane.b32.xlu0 %v1676, 126
    %v1685 = vpop.permute.xlu0 %1684
    %1686 = vrot.lane.b32.xlu0 %v1677, 126
    %v1687 = vpop.permute.xlu0 %1686
    %1688 = vrot.lane.b32.xlu0 %v1678, 126
    %v1689 = vpop.permute.xlu0 %1688
    %1690 = vrot.lane.b32.xlu0 %v1679, 126
    %v1691 = vpop.permute.xlu0 %1690
    %v1696 = vadd.f32 %v1618, %v1685
    %v1697 = vadd.f32 %v1619, %v1687
    %v1698 = vadd.f32 %v1620, %v1689
    %v1699 = vadd.f32 %v1621, %v1691
    %s1700 = sld [smem:[#allocation2 + $0x35]]
    %v1701 = vstv %s1700
    %v1702 = vmul.f32 %v1701, %v1562
    %v1703 = vmul.f32 %v1701, %v1563
    %v1704 = vmul.f32 %v1701, %v1564
    %v1705 = vmul.f32 %v1701, %v1565
    %1710 = vrot.lane.b32.xlu0 %v1702, 126
    %v1711 = vpop.permute.xlu0 %1710
    %1712 = vrot.lane.b32.xlu0 %v1703, 126
    %v1713 = vpop.permute.xlu0 %1712
    %1714 = vrot.lane.b32.xlu0 %v1704, 126
    %v1715 = vpop.permute.xlu0 %1714
    %1716 = vrot.lane.b32.xlu0 %v1705, 126
    %v1717 = vpop.permute.xlu0 %1716
    %v1722 = vadd.f32 %v1644, %v1711
    %v1723 = vadd.f32 %v1645, %v1713
    %v1724 = vadd.f32 %v1646, %v1715
    %v1725 = vadd.f32 %v1647, %v1717
    %s1726 = sld [smem:[#allocation2 + $0x50]]
    %v1727 = vstv %s1726
    %v1728 = vmul.f32 %v1727, %v1562
    %v1729 = vmul.f32 %v1727, %v1563
    %v1730 = vmul.f32 %v1727, %v1564
    %v1731 = vmul.f32 %v1727, %v1565
    %1736 = vrot.lane.b32.xlu0 %v1728, 126
    %v1737 = vpop.permute.xlu0 %1736
    %1738 = vrot.lane.b32.xlu0 %v1729, 126
    %v1739 = vpop.permute.xlu0 %1738
    %1740 = vrot.lane.b32.xlu0 %v1730, 126
    %v1741 = vpop.permute.xlu0 %1740
    %1742 = vrot.lane.b32.xlu0 %v1731, 126
    %v1743 = vpop.permute.xlu0 %1742
    %v1748 = vadd.f32 %v1670, %v1737
    %v1749 = vadd.f32 %v1671, %v1739
    %v1750 = vadd.f32 %v1672, %v1741
    %v1751 = vadd.f32 %v1673, %v1743
    %v1752 = vmax.f32 %v1696, 0.0
    %v1753 = vmax.f32 %v1697, 0.0
    %v1754 = vmax.f32 %v1698, 0.0
    %v1755 = vmax.f32 %v1699, 0.0
    %vm1756 = vcmask 113664
    %1757 = vst.msk [vmem:[%s2] sm:$0xff] %vm1756, %v1752
    %vm1758 = vcmask 111616
    %1759 = vst.msk [vmem:[%s2 + $0x8] sm:$0x3f] %vm1758, %v1753
    %1760 = vst.msk [vmem:[%s2 + $0x30] sm:$0xff] %vm1756, %v1754
    %1761 = vst.msk [vmem:[%s2 + $0x38] sm:$0x3f] %vm1758, %v1755
    %v1762 = vmax.f32 %v1722, 0.0
    %v1763 = vmax.f32 %v1723, 0.0
    %v1764 = vmax.f32 %v1724, 0.0
    %v1765 = vmax.f32 %v1725, 0.0
    %s1766 = scalar_lea.vmem %s2, 16
    %1767 = vst.msk [vmem:[%s1766] sm:$0xff] %vm1756, %v1762
    %1768 = vst.msk [vmem:[%s1766 + $0x8] sm:$0x3f] %vm1758, %v1763
    %1769 = vst.msk [vmem:[%s1766 + $0x30] sm:$0xff] %vm1756, %v1764
    %1770 = vst.msk [vmem:[%s1766 + $0x38] sm:$0x3f] %vm1758, %v1765
    %v1771 = vmax.f32 %v1748, 0.0
    %v1772 = vmax.f32 %v1749, 0.0
    %v1773 = vmax.f32 %v1750, 0.0
    %v1774 = vmax.f32 %v1751, 0.0
    %s1775 = scalar_lea.vmem %s2, 32
    %1776 = vst.msk [vmem:[%s1775] sm:$0xff] %vm1756, %v1771
    %1777 = vst.msk [vmem:[%s1775 + $0x8] sm:$0x3f] %vm1758, %v1772
    %1778 = vst.msk [vmem:[%s1775 + $0x30] sm:$0xff] %vm1756, %v1773
    %1779 = vst.msk [vmem:[%s1775 + $0x38] sm:$0x3f] %vm1758, %v1774
    // Predicated region
    $region18: #{tpu_custom_call.1} parent=1 // pred_check
      _
    $region19: #{tpu_custom_call.1} parent=1 // pred_check_branch
      %1781 = sbr.rel (0) target = $region21
    $region20: #{tpu_custom_call.1} parent=1 // pred_region
      _
    $region21: #{tpu_custom_call.1} parent=1 // pred_fallthru
      _
    // Predicated region
    $region22: #{tpu_custom_call.1} parent=1 // pred_check
      _
    $region23: #{tpu_custom_call.1} parent=1 // pred_check_branch
      %1783 = sbr.rel (0) target = $region25
    $region24: #{tpu_custom_call.1} parent=1 // pred_region
      _
    $region25: #{tpu_custom_call.1} parent=1 // pred_fallthru
      _
    %1784 = vsyncpa [#allocation3], 1
    %1785 = vsyncpa [#allocation4], 1

</llo_original>
